<compile_context>
chip_gen: v7x
topology: tpu7x:2x2x1
jax: 0.10.0
libtpu: 0.0.40
codegen_flags: <defaults>
</compile_context>

<pallas_src>
import jax
import jax.numpy as jnp
from jax.experimental import pallas as pl
from jax.experimental.pallas import tpu as pltpu


# --------------------------------------------------------------------------- #
# Shared in-kernel helpers
# --------------------------------------------------------------------------- #
def _lane_gather(values, idx):
    """Gather along the lane (last) axis. values: (R, L); idx: (1, L) int32 in-bounds."""
    return jnp.take_along_axis(values, jnp.broadcast_to(idx, values.shape),
                               axis=1, mode="promise_in_bounds")


def _bilinear_terms(coord_ref, flow_ref, H, W):
    """Corner integer coords and zero-padded bilinear corner weights, all (1, HWp)."""
    sx = W / (W - 1.0)
    sy = H / (H - 1.0)
    fx = flow_ref[0:1, :].astype(jnp.float32)
    fy = flow_ref[1:2, :].astype(jnp.float32)
    # grid_sample (align_corners=False) source coords of the warp() base grid.
    ix = coord_ref[0:1, :] + fx * sx
    iy = coord_ref[1:2, :] + fy * sy
    x0f = jnp.floor(ix)
    y0f = jnp.floor(iy)
    wx1 = ix - x0f
    wx0 = 1.0 - wx1
    wy1 = iy - y0f
    wy0 = 1.0 - wy1
    x0 = x0f.astype(jnp.int32)
    y0 = y0f.astype(jnp.int32)
    x1 = x0 + 1
    y1 = y0 + 1

    def inb(v, n):
        return ((v >= 0) & (v < n)).astype(jnp.float32)

    wv00 = wy0 * wx0 * inb(y0, H) * inb(x0, W)
    wv01 = wy0 * wx1 * inb(y0, H) * inb(x1, W)
    wv10 = wy1 * wx0 * inb(y1, H) * inb(x0, W)
    wv11 = wy1 * wx1 * inb(y1, H) * inb(x1, W)
    return (x0, x1, y0, y1), (wv00, wv01, wv10, wv11)


def _finish(warped, wvs, tgt_ref, out_ref):
    """Validity mask (ones-channel warp > 0.999), SSE vs. target, lane-dense partial."""
    mask = ((wvs[0] + wvs[1] + wvs[2] + wvs[3]) > 0.999).astype(jnp.float32)
    diff = tgt_ref[...].astype(jnp.float32) - warped * mask
    ssq = jnp.sum(diff * diff, axis=1, keepdims=True)   # (Cp, 1)
    ssq = jnp.sum(ssq, axis=0, keepdims=True)           # (1, 1)
    out_ref[...] = jnp.broadcast_to(ssq, out_ref.shape)


# --------------------------------------------------------------------------- #
# Kernel bodies
# --------------------------------------------------------------------------- #
def _make_gather_kernel(H, W):
    """O(C*HW) path: 4-corner lane gather on the resident (Cp, HWp) source slice."""
    def kernel(coord_ref, flow_ref, tgt_ref, src_ref, out_ref):
        (x0, x1, y0, y1), wvs = _bilinear_terms(coord_ref, flow_ref, H, W)
        # OOB corners have weight 0; clip indices so the gather stays in-bounds.
        x0c = jnp.clip(x0, 0, W - 1)
        x1c = jnp.clip(x1, 0, W - 1)
        y0c = jnp.clip(y0, 0, H - 1)
        y1c = jnp.clip(y1, 0, H - 1)
        image = src_ref[...].astype(jnp.float32)               # (Cp, HWp)
        warped = (wvs[0] * _lane_gather(image, y0c * W + x0c)
                  + wvs[1] * _lane_gather(image, y0c * W + x1c)
                  + wvs[2] * _lane_gather(image, y1c * W + x0c)
                  + wvs[3] * _lane_gather(image, y1c * W + x1c))
        _finish(warped, wvs, tgt_ref, out_ref)
    return kernel


def _make_matmul_kernel(Cp, H, W, HWp, TQ, NQ):
    """Fallback: q-tiled weighted one-hot scatter contracted on the MXU.

    Improved vs. rev 2: chained where-selects (half the VALU ops / live temps),
    fully unrolled q loop, lane-dense HWp everywhere.
    """
    # Note: operand flip (stream HW through the MXU as M) would need a transposed
    # input layout; omitted here since this path only runs when lane gather is
    # unavailable on the target chip.
    def kernel(coord_ref, flow_ref, tgt_ref, src_ref, out_ref):
        (x0, x1, y0, y1), wvs = _bilinear_terms(coord_ref, flow_ref, H, W)
        wv00, wv01, wv10, wv11 = wvs
        idx00 = y0 * W + x0        # other corners at +1, +W, +W+1 (OOB weights are 0)

        def st_tile(q0):
            q_iota = jax.lax.broadcasted_iota(jnp.int32, (TQ, 1), 0) + q0
            dlt = q_iota - idx00                                 # (TQ, HWp)
            # The four corner offsets are mutually exclusive (W >= 2), so chained
            # selects are bit-exact with the weighted one-hot sum.
            st = jnp.where(dlt == 0, wv00, 0.0)
            st = jnp.where(dlt == 1, wv01, st)
            st = jnp.where(dlt == W, wv10, st)
            st = jnp.where(dlt == W + 1, wv11, st)
            return st

        def qbody(qt, acc):
            q0 = pl.multiple_of(qt * TQ, TQ)
            im_tile = src_ref[:, pl.ds(q0, TQ)].astype(jnp.float32)   # (Cp, TQ)
            return acc + jnp.dot(im_tile, st_tile(q0),
                                 preferred_element_type=jnp.float32)

        warped = jax.lax.fori_loop(0, NQ, qbody,
                                   jnp.zeros((Cp, HWp), jnp.float32),
                                   unroll=True)
        _finish(warped, wvs, tgt_ref, out_ref)
    return kernel


# --------------------------------------------------------------------------- #
# One-off probe: is the lane gather supported (and correct) on this chip?
# --------------------------------------------------------------------------- #
_GATHER_OK = {}


def _lane_gather_supported(rows, lanes):
    key = (rows, lanes)
    if key in _GATHER_OK:
        return _GATHER_OK[key]

    def probe_kernel(x_ref, i_ref, o_ref):
        o_ref[...] = _lane_gather(x_ref[...], i_ref[...])

    x = jnp.arange(rows * lanes, dtype=jnp.float32).reshape(rows, lanes) * 0.5 + 1.0
    idx = ((jnp.arange(lanes, dtype=jnp.int32) * 7 + 131) % lanes)[None, :]
    try:
        got = pl.pallas_call(
            probe_kernel,
            out_shape=jax.ShapeDtypeStruct((rows, lanes), jnp.float32),
        )(x, idx)
        ok = bool(jnp.allclose(got, _lane_gather(x, idx)))
    except Exception:
        ok = False
    _GATHER_OK[key] = ok
    return ok


# --------------------------------------------------------------------------- #
# Wrapper
# --------------------------------------------------------------------------- #
def self_supervised_loss(raw_bev_feat, instance_flow):
    """raw_bev_feat: (B, T, C, H, W), instance_flow: (B, T-1, 2, H, W)."""
    B, T, C, H, W = raw_bev_feat.shape
    assert T >= 3 and instance_flow.shape[1] >= 2
    assert H > 1 and W > 1, "H == 1 or W == 1 is degenerate for the warp (as in PyTorch)"
    HW = H * W
    LANE, SUB = 128, 8
    HWp = ((HW + LANE - 1) // LANE) * LANE
    Cp = ((C + SUB - 1) // SUB) * SUB

    # Lane/sublane-dense, zero-padded feature & flow slabs in their NATIVE dtype.
    feat = raw_bev_feat.reshape(B, T, C, HW)[:, :3]
    flow = instance_flow.reshape(B, instance_flow.shape[1], 2, HW)[:, :2]
    feat = jnp.pad(feat, ((0, 0), (0, 0), (0, Cp - C), (0, HWp - HW)))
    flow = jnp.pad(flow, ((0, 0), (0, 0), (0, 0), (0, HWp - HW)))

    # Grid-invariant source-coordinate bases; padded lanes get an off-grid sentinel
    # so every corner weight there is exactly zero (keeps the SSE unchanged).
    p = jnp.arange(HWp, dtype=jnp.int32)
    in_range = p < HW
    bx = jnp.where(in_range, (p % W).astype(jnp.float32) * (W / (W - 1.0)) - 0.5, -4.0)
    by = jnp.where(in_range, (p // W).astype(jnp.float32) * (H / (H - 1.0)) - 0.5, -4.0)
    coords = jnp.stack([bx, by]).astype(jnp.float32)            # (2, HWp)

    # Generation-aware VMEM budget (64 MiB on v7x, 128 MiB on v5e/v6e), ~15% headroom.
    try:
        cap = int(getattr(pltpu.get_tpu_info(), "vmem_capacity_bytes", 128 << 20))
    except Exception:
        cap = 128 << 20
    headroom = int(cap * 0.85)

    fb = jnp.dtype(feat.dtype).itemsize
    lb = jnp.dtype(flow.dtype).itemsize
    block_bytes = (2 * 2 * HWp * 4            # coords (double-buffered)
                   + 2 * 2 * HWp * lb         # flow block
                   + 2 * 2 * Cp * HWp * fb    # target + source per-slice blocks
                   + 2 * 8 * 128 * 4)         # output block

    # q-tile for the matmul fallback, sized from the VMEM budget (~4 live (TQ,HWp) f32).
    tq_budget = max(int(cap * 0.3) // (4 * HWp * 4), 1)
    TQ = max(LANE, min(512, HWp, (tq_budget // LANE) * LANE))
    while HWp % TQ:
        TQ -= LANE
    NQ = HWp // TQ

    gather_tmp = (12 * Cp + 32) * HWp * 4
    matmul_tmp = (4 * TQ * HWp + 2 * Cp * HWp + Cp * TQ + 32 * HWp) * 4

    dims = ("parallel", "arbitrary") if B >= 2 else ("parallel", "parallel")

    def run(kernel, tmp_bytes):
        vmem_limit = int(min(max(2 * (block_bytes + tmp_bytes), 32 << 20), headroom))
        return pl.pallas_call(
            kernel,
            out_shape=jax.ShapeDtypeStruct((B, 2, 8, 128), jnp.float32),
            grid=(B, 2),                 # axis 0: batch, axis 1: j = i - 1 in {0, 1}
            in_specs=[
                pl.BlockSpec((2, HWp), lambda b, j: (0, 0)),                        # coords
                pl.BlockSpec((None, None, 2, HWp), lambda b, j: (b, j, 0, 0)),      # flow[b, j]
                pl.BlockSpec((None, None, Cp, HWp), lambda b, j: (b, j, 0, 0)),     # target feat[b, j]
                pl.BlockSpec((None, None, Cp, HWp), lambda b, j: (b, j + 1, 0, 0)), # source feat[b, j+1]
            ],
            out_specs=pl.BlockSpec((None, None, 8, 128), lambda b, j: (b, j, 0, 0)),
            compiler_params=pltpu.CompilerParams(
                dimension_semantics=dims,
                vmem_limit_bytes=vmem_limit),
        )(coords, flow, feat, feat)

    if _lane_gather_supported(Cp, HWp):
        try:
            out = run(_make_gather_kernel(H, W), gather_tmp)
        except Exception:
            out = run(_make_matmul_kernel(Cp, H, W, HWp, TQ, NQ), matmul_tmp)
    else:
        out = run(_make_matmul_kernel(Cp, H, W, HWp, TQ, NQ), matmul_tmp)

    # Per-(b, j) raw SSE partials -> final summed mean-squared-error
    # (MSELoss 'mean' denominator uses the TRUE element count, not the padded one).
    return jnp.sum(out[:, :, 0, 0]) * (1.0 / float(B * C * H * W))


# ----------------------- pure-JAX reference (for validation) -----------------------
def _warp_ref(im, flow):
    N, C, H, W = im.shape
    w_i = jnp.arange(W, dtype=jnp.float32)
    h_i = jnp.arange(H, dtype=jnp.float32)
    base_x = jnp.broadcast_to((2.0 * w_i / (W - 1.0) - 1.0)[None, None, :], (N, H, W))
    base_y = jnp.broadcast_to((2.0 * h_i / (H - 1.0) - 1.0)[None, :, None], (N, H, W))
    gx = base_x + flow[:, 0] * (2.0 / (W - 1.0))
    gy = base_y + flow[:, 1] * (2.0 / (H - 1.0))
    ix = ((gx + 1.0) * W - 1.0) * 0.5
    iy = ((gy + 1.0) * H - 1.0) * 0.5
    x0 = jnp.floor(ix)
    y0 = jnp.floor(iy)
    wx1 = ix - x0
    wx0 = 1.0 - wx1
    wy1 = iy - y0
    wy0 = 1.0 - wy1
    im_aug = jnp.concatenate([im, jnp.ones((N, 1, H, W), im.dtype)], axis=1)

    def sample(yc, xc, wgt):
        valid = (xc >= 0) & (xc < W) & (yc >= 0) & (yc < H)
        xi = jnp.clip(xc, 0, W - 1).astype(jnp.int32)
        yi = jnp.clip(yc, 0, H - 1).astype(jnp.int32)
        vals = im_aug[jnp.arange(N)[:, None, None, None],
                      jnp.arange(C + 1)[None, :, None, None],
                      yi[:, None, :, :],
                      xi[:, None, :, :]]
        return vals * (wgt * valid.astype(im.dtype))[:, None, :, :]

    out = (sample(y0, x0, wy0 * wx0) + sample(y0, x0 + 1, wy0 * wx1)
           + sample(y0 + 1, x0, wy1 * wx0) + sample(y0 + 1, x0 + 1, wy1 * wx1))
    mask = (out[:, -1:] > 0.999).astype(im.dtype)
    return out[:, :-1] * mask


def _loss_ref(raw_bev_feat, instance_flow):
    total = jnp.float32(0.0)
    for i in range(1, 3):
        warped = _warp_ref(raw_bev_feat[:, i], instance_flow[:, i - 1])
        total += jnp.mean((raw_bev_feat[:, i - 1] - warped) ** 2)
    return total


if __name__ == "__main__":
    key = jax.random.PRNGKey(0)
    k1, k2 = jax.random.split(key)
    B, T, C, H, W = 2, 3, 4, 16, 16
    raw_bev_feat = jax.random.normal(k1, (B, T, C, H, W), jnp.float32)
    instance_flow = 2.0 * jax.random.normal(k2, (B, T - 1, 2, H, W), jnp.float32)

    loss = jax.block_until_ready(self_supervised_loss(raw_bev_feat, instance_flow))
    ref = jax.block_until_ready(_loss_ref(raw_bev_feat, instance_flow))
    assert jnp.allclose(loss, ref, rtol=1e-4, atol=1e-5), (loss, ref)
    print("KERNEL_OK")
</pallas_src>

<mosaic_0001>
module attributes {stable_mosaic.version = 11 : i64} {
  func.func @probe_kernel(%arg0: memref<8x256xf32, #tpu.memory_space<vmem>>, %arg1: memref<1x256xi32, #tpu.memory_space<vmem>>, %arg2: memref<8x256xf32, #tpu.memory_space<vmem>>) attributes {dimension_semantics = [], scalar_prefetch = 0 : i64, scratch_operands = 0 : i64, tpu.core_type = #tpu.core_type<tc>} {
    %c0 = arith.constant 0 : index
    %c0_0 = arith.constant 0 : index
    %0 = vector.load %arg0[%c0, %c0_0] : memref<8x256xf32, #tpu.memory_space<vmem>>, vector<8x256xf32>
    %c0_1 = arith.constant 0 : index
    %c0_2 = arith.constant 0 : index
    %1 = vector.load %arg1[%c0_1, %c0_2] : memref<1x256xi32, #tpu.memory_space<vmem>>, vector<1x256xi32>
    %2 = vector.shape_cast %1 : vector<1x256xi32> to vector<1x256xi32>
    %3 = vector.broadcast %2 : vector<1x256xi32> to vector<8x256xi32>
    %4 = vector.shape_cast %3 : vector<8x256xi32> to vector<8x256x1xi32>
    %5 = vector.shape_cast %4 : vector<8x256x1xi32> to vector<8x256xi32>
    %6 = tpu.dynamic_gather %0[%5] in [1] : vector<8x256xf32>, vector<8x256xi32> -> vector<8x256xf32>
    %c0_3 = arith.constant 0 : index
    %c0_4 = arith.constant 0 : index
    %7 = vector.load %arg2[%c0_3, %c0_4] : memref<8x256xf32, #tpu.memory_space<vmem>>, vector<8x256xf32>
    tpu.vector_store %arg2[%c0_3, %c0_4], %6 {strides = array<i32>} : memref<8x256xf32, #tpu.memory_space<vmem>>, vector<8x256xf32>,
    return
  }
}

module attributes {stable_mosaic.version = 11 : i64} {
  func.func @kernel(%arg0: i32, %arg1: i32, %arg2: memref<2x256xf32, #tpu.memory_space<vmem>>, %arg3: memref<1x1x2x256xf32, #tpu.memory_space<vmem>>, %arg4: memref<1x1x8x256xf32, #tpu.memory_space<vmem>>, %arg5: memref<1x1x8x256xf32, #tpu.memory_space<vmem>>, %arg6: memref<1x1x8x128xf32, #tpu.memory_space<vmem>>) attributes {dimension_semantics = [#tpu.dimension_semantics<parallel>, #tpu.dimension_semantics<arbitrary>], iteration_bounds = array<i64: 2, 2>, scalar_prefetch = 0 : i64, scratch_operands = 0 : i64, tpu.core_type = #tpu.core_type<tc>, window_params = [{pipeline_mode = #tpu.pipeline_mode<synchronous>, transform_indices = @transform_0, window_bounds = array<i64: 2, 256>}, {transform_indices = @transform_1, window_bounds = array<i64: 1, 1, 2, 256>}, {transform_indices = @transform_2, window_bounds = array<i64: 1, 1, 8, 256>}, {transform_indices = @transform_3, window_bounds = array<i64: 1, 1, 8, 256>}, {transform_indices = @transform_4, window_bounds = array<i64: 1, 1, 8, 128>}]} {
    %c0 = arith.constant 0 : index
    %c0_0 = arith.constant 0 : index
    %c0_1 = arith.constant 0 : index
    %c0_2 = arith.constant 0 : index
    %0 = vector.load %arg3[%c0, %c0_0, %c0_1, %c0_2] : memref<1x1x2x256xf32, #tpu.memory_space<vmem>>, vector<1x1x1x256xf32>
    %1 = vector.shape_cast %0 : vector<1x1x1x256xf32> to vector<1x256xf32>
    %c0_3 = arith.constant 0 : index
    %c0_4 = arith.constant 0 : index
    %c1 = arith.constant 1 : index
    %c0_5 = arith.constant 0 : index
    %2 = vector.load %arg3[%c0_3, %c0_4, %c1, %c0_5] : memref<1x1x2x256xf32, #tpu.memory_space<vmem>>, vector<1x1x1x256xf32>
    %3 = vector.shape_cast %2 : vector<1x1x1x256xf32> to vector<1x256xf32>
    %c0_6 = arith.constant 0 : index
    %c0_7 = arith.constant 0 : index
    %4 = vector.load %arg2[%c0_6, %c0_7] : memref<2x256xf32, #tpu.memory_space<vmem>>, vector<1x256xf32>
    %cst = arith.constant 1.06666672 : f32
    %5 = vector.broadcast %cst : f32 to vector<1x256xf32>
    %6 = arith.mulf %1, %5 : vector<1x256xf32>
    %7 = arith.addf %4, %6 : vector<1x256xf32>
    %c1_8 = arith.constant 1 : index
    %c0_9 = arith.constant 0 : index
    %8 = vector.load %arg2[%c1_8, %c0_9] : memref<2x256xf32, #tpu.memory_space<vmem>>, vector<1x256xf32>
    %cst_10 = arith.constant 1.06666672 : f32
    %9 = vector.broadcast %cst_10 : f32 to vector<1x256xf32>
    %10 = arith.mulf %3, %9 : vector<1x256xf32>
    %11 = arith.addf %8, %10 : vector<1x256xf32>
    %12 = math.floor %7 : vector<1x256xf32>
    %13 = math.floor %11 : vector<1x256xf32>
    %14 = arith.subf %7, %12 : vector<1x256xf32>
    %cst_11 = arith.constant 1.000000e+00 : f32
    %15 = vector.broadcast %cst_11 : f32 to vector<1x256xf32>
    %16 = arith.subf %15, %14 : vector<1x256xf32>
    %17 = arith.subf %11, %13 : vector<1x256xf32>
    %cst_12 = arith.constant 1.000000e+00 : f32
    %18 = vector.broadcast %cst_12 : f32 to vector<1x256xf32>
    %19 = arith.subf %18, %17 : vector<1x256xf32>
    %20 = arith.fptosi %12 : vector<1x256xf32> to vector<1x256xi32>
    %21 = arith.fptosi %13 : vector<1x256xf32> to vector<1x256xi32>
    %c1_i32 = arith.constant 1 : i32
    %22 = vector.broadcast %c1_i32 : i32 to vector<1x256xi32>
    %23 = arith.addi %20, %22 : vector<1x256xi32>
    %c1_i32_13 = arith.constant 1 : i32
    %24 = vector.broadcast %c1_i32_13 : i32 to vector<1x256xi32>
    %25 = arith.addi %21, %24 : vector<1x256xi32>
    %26 = arith.mulf %19, %16 : vector<1x256xf32>
    %c0_i32 = arith.constant 0 : i32
    %27 = vector.broadcast %c0_i32 : i32 to vector<1x256xi32>
    %28 = arith.cmpi sge, %21, %27 : vector<1x256xi32>
    %c16_i32 = arith.constant 16 : i32
    %29 = vector.broadcast %c16_i32 : i32 to vector<1x256xi32>
    %30 = arith.cmpi slt, %21, %29 : vector<1x256xi32>
    %31 = arith.andi %28, %30 : vector<1x256xi1>
    %32 = arith.extui %31 : vector<1x256xi1> to vector<1x256xi32>
    %33 = arith.sitofp %32 : vector<1x256xi32> to vector<1x256xf32>
    %34 = arith.mulf %26, %33 : vector<1x256xf32>
    %c0_i32_14 = arith.constant 0 : i32
    %35 = vector.broadcast %c0_i32_14 : i32 to vector<1x256xi32>
    %36 = arith.cmpi sge, %20, %35 : vector<1x256xi32>
    %c16_i32_15 = arith.constant 16 : i32
    %37 = vector.broadcast %c16_i32_15 : i32 to vector<1x256xi32>
    %38 = arith.cmpi slt, %20, %37 : vector<1x256xi32>
    %39 = arith.andi %36, %38 : vector<1x256xi1>
    %40 = arith.extui %39 : vector<1x256xi1> to vector<1x256xi32>
    %41 = arith.sitofp %40 : vector<1x256xi32> to vector<1x256xf32>
    %42 = arith.mulf %34, %41 : vector<1x256xf32>
    %43 = arith.mulf %19, %14 : vector<1x256xf32>
    %c0_i32_16 = arith.constant 0 : i32
    %44 = vector.broadcast %c0_i32_16 : i32 to vector<1x256xi32>
    %45 = arith.cmpi sge, %21, %44 : vector<1x256xi32>
    %c16_i32_17 = arith.constant 16 : i32
    %46 = vector.broadcast %c16_i32_17 : i32 to vector<1x256xi32>
    %47 = arith.cmpi slt, %21, %46 : vector<1x256xi32>
    %48 = arith.andi %45, %47 : vector<1x256xi1>
    %49 = arith.extui %48 : vector<1x256xi1> to vector<1x256xi32>
    %50 = arith.sitofp %49 : vector<1x256xi32> to vector<1x256xf32>
    %51 = arith.mulf %43, %50 : vector<1x256xf32>
    %c0_i32_18 = arith.constant 0 : i32
    %52 = vector.broadcast %c0_i32_18 : i32 to vector<1x256xi32>
    %53 = arith.cmpi sge, %23, %52 : vector<1x256xi32>
    %c16_i32_19 = arith.constant 16 : i32
    %54 = vector.broadcast %c16_i32_19 : i32 to vector<1x256xi32>
    %55 = arith.cmpi slt, %23, %54 : vector<1x256xi32>
    %56 = arith.andi %53, %55 : vector<1x256xi1>
    %57 = arith.extui %56 : vector<1x256xi1> to vector<1x256xi32>
    %58 = arith.sitofp %57 : vector<1x256xi32> to vector<1x256xf32>
    %59 = arith.mulf %51, %58 : vector<1x256xf32>
    %60 = arith.mulf %17, %16 : vector<1x256xf32>
    %c0_i32_20 = arith.constant 0 : i32
    %61 = vector.broadcast %c0_i32_20 : i32 to vector<1x256xi32>
    %62 = arith.cmpi sge, %25, %61 : vector<1x256xi32>
    %c16_i32_21 = arith.constant 16 : i32
    %63 = vector.broadcast %c16_i32_21 : i32 to vector<1x256xi32>
    %64 = arith.cmpi slt, %25, %63 : vector<1x256xi32>
    %65 = arith.andi %62, %64 : vector<1x256xi1>
    %66 = arith.extui %65 : vector<1x256xi1> to vector<1x256xi32>
    %67 = arith.sitofp %66 : vector<1x256xi32> to vector<1x256xf32>
    %68 = arith.mulf %60, %67 : vector<1x256xf32>
    %c0_i32_22 = arith.constant 0 : i32
    %69 = vector.broadcast %c0_i32_22 : i32 to vector<1x256xi32>
    %70 = arith.cmpi sge, %20, %69 : vector<1x256xi32>
    %c16_i32_23 = arith.constant 16 : i32
    %71 = vector.broadcast %c16_i32_23 : i32 to vector<1x256xi32>
    %72 = arith.cmpi slt, %20, %71 : vector<1x256xi32>
    %73 = arith.andi %70, %72 : vector<1x256xi1>
    %74 = arith.extui %73 : vector<1x256xi1> to vector<1x256xi32>
    %75 = arith.sitofp %74 : vector<1x256xi32> to vector<1x256xf32>
    %76 = arith.mulf %68, %75 : vector<1x256xf32>
    %77 = arith.mulf %17, %14 : vector<1x256xf32>
    %c0_i32_24 = arith.constant 0 : i32
    %78 = vector.broadcast %c0_i32_24 : i32 to vector<1x256xi32>
    %79 = arith.cmpi sge, %25, %78 : vector<1x256xi32>
    %c16_i32_25 = arith.constant 16 : i32
    %80 = vector.broadcast %c16_i32_25 : i32 to vector<1x256xi32>
    %81 = arith.cmpi slt, %25, %80 : vector<1x256xi32>
    %82 = arith.andi %79, %81 : vector<1x256xi1>
    %83 = arith.extui %82 : vector<1x256xi1> to vector<1x256xi32>
    %84 = arith.sitofp %83 : vector<1x256xi32> to vector<1x256xf32>
    %85 = arith.mulf %77, %84 : vector<1x256xf32>
    %c0_i32_26 = arith.constant 0 : i32
    %86 = vector.broadcast %c0_i32_26 : i32 to vector<1x256xi32>
    %87 = arith.cmpi sge, %23, %86 : vector<1x256xi32>
    %c16_i32_27 = arith.constant 16 : i32
    %88 = vector.broadcast %c16_i32_27 : i32 to vector<1x256xi32>
    %89 = arith.cmpi slt, %23, %88 : vector<1x256xi32>
    %90 = arith.andi %87, %89 : vector<1x256xi1>
    %91 = arith.extui %90 : vector<1x256xi1> to vector<1x256xi32>
    %92 = arith.sitofp %91 : vector<1x256xi32> to vector<1x256xf32>
    %93 = arith.mulf %85, %92 : vector<1x256xf32>
    %c16_i32_28 = arith.constant 16 : i32
    %94 = vector.broadcast %c16_i32_28 : i32 to vector<1x256xi32>
    %95 = arith.muli %21, %94 : vector<1x256xi32>
    %96 = arith.addi %95, %20 : vector<1x256xi32>
    %cst_29 = arith.constant 0.000000e+00 : f32
    %97 = vector.broadcast %cst_29 : f32 to vector<8x256xf32>
    %c0_i32_30 = arith.constant 0 : i32
    %c256_i32 = arith.constant 256 : i32
    %98 = arith.muli %c0_i32_30, %c256_i32 : i32
    %99 = tpu.assume_multiple %98, 256 : i32
    %c0_31 = arith.constant 0 : index
    %c0_32 = arith.constant 0 : index
    %c0_33 = arith.constant 0 : index
    %100 = arith.index_cast %99 : i32 to index
    %101 = vector.load %arg5[%c0_31, %c0_32, %c0_33, %100] : memref<1x1x8x256xf32, #tpu.memory_space<vmem>>, vector<1x1x8x256xf32>
    %102 = vector.shape_cast %101 : vector<1x1x8x256xf32> to vector<8x256xf32>
    %103 = tpu.iota {dimensions = array<i32: 0>} : vector<256x1xi32>
    %104 = vector.broadcast %99 : i32 to vector<256x1xi32>
    %105 = arith.addi %103, %104 : vector<256x1xi32>
    %106 = vector.broadcast %105 : vector<256x1xi32> to vector<256x256xi32>
    %107 = vector.broadcast %96 : vector<1x256xi32> to vector<256x256xi32>
    %108 = arith.subi %106, %107 : vector<256x256xi32>
    %c0_i32_34 = arith.constant 0 : i32
    %109 = vector.broadcast %c0_i32_34 : i32 to vector<256x256xi32>
    %110 = arith.cmpi eq, %108, %109 : vector<256x256xi32>
    %cst_35 = arith.constant 0.000000e+00 : f32
    %111 = vector.shape_cast %42 : vector<1x256xf32> to vector<1x256xf32>
    %112 = vector.broadcast %111 : vector<1x256xf32> to vector<256x256xf32>
    %113 = vector.broadcast %cst_35 : f32 to vector<256x256xf32>
    %114 = arith.select %110, %112, %113 : vector<256x256xi1>, vector<256x256xf32>
    %c1_i32_36 = arith.constant 1 : i32
    %115 = vector.broadcast %c1_i32_36 : i32 to vector<256x256xi32>
    %116 = arith.cmpi eq, %108, %115 : vector<256x256xi32>
    %117 = vector.shape_cast %59 : vector<1x256xf32> to vector<1x256xf32>
    %118 = vector.broadcast %117 : vector<1x256xf32> to vector<256x256xf32>
    %119 = arith.select %116, %118, %114 : vector<256x256xi1>, vector<256x256xf32>
    %c16_i32_37 = arith.constant 16 : i32
    %120 = vector.broadcast %c16_i32_37 : i32 to vector<256x256xi32>
    %121 = arith.cmpi eq, %108, %120 : vector<256x256xi32>
    %122 = vector.shape_cast %76 : vector<1x256xf32> to vector<1x256xf32>
    %123 = vector.broadcast %122 : vector<1x256xf32> to vector<256x256xf32>
    %124 = arith.select %121, %123, %119 : vector<256x256xi1>, vector<256x256xf32>
    %c17_i32 = arith.constant 17 : i32
    %125 = vector.broadcast %c17_i32 : i32 to vector<256x256xi32>
    %126 = arith.cmpi eq, %108, %125 : vector<256x256xi32>
    %127 = vector.shape_cast %93 : vector<1x256xf32> to vector<1x256xf32>
    %128 = vector.broadcast %127 : vector<1x256xf32> to vector<256x256xf32>
    %129 = arith.select %126, %128, %124 : vector<256x256xi1>, vector<256x256xf32>
    %cst_38 = arith.constant dense<0.000000e+00> : vector<8x256xf32>
    %130 = tpu.matmul %102, %129, %cst_38 {dimension_numbers = #tpu.dot_dimension_numbers<[1], [0], [0], [1], [0, 0, 1, 1], [], []>} : vector<8x256xf32>, vector<256x256xf32>, vector<8x256xf32> -> vector<8x256xf32>
    %131 = arith.addf %97, %130 : vector<8x256xf32>
    %c1_i32_39 = arith.constant 1 : i32
    %132 = arith.addf %42, %59 : vector<1x256xf32>
    %133 = arith.addf %132, %76 : vector<1x256xf32>
    %134 = arith.addf %133, %93 : vector<1x256xf32>
    %cst_40 = arith.constant 9.990000e-01 : f32
    %135 = vector.broadcast %cst_40 : f32 to vector<1x256xf32>
    %136 = arith.cmpf ogt, %134, %135 : vector<1x256xf32>
    %137 = arith.extui %136 : vector<1x256xi1> to vector<1x256xi32>
    %138 = arith.sitofp %137 : vector<1x256xi32> to vector<1x256xf32>
    %c0_41 = arith.constant 0 : index
    %c0_42 = arith.constant 0 : index
    %c0_43 = arith.constant 0 : index
    %c0_44 = arith.constant 0 : index
    %139 = vector.load %arg4[%c0_41, %c0_42, %c0_43, %c0_44] : memref<1x1x8x256xf32, #tpu.memory_space<vmem>>, vector<1x1x8x256xf32>
    %140 = vector.shape_cast %139 : vector<1x1x8x256xf32> to vector<8x256xf32>
    %141 = vector.broadcast %138 : vector<1x256xf32> to vector<8x256xf32>
    %142 = arith.mulf %131, %141 : vector<8x256xf32>
    %143 = arith.subf %140, %142 : vector<8x256xf32>
    %144 = arith.mulf %143, %143 : vector<8x256xf32>
    %cst_45 = arith.constant dense<0.000000e+00> : vector<8xf32>
    %145 = vector.multi_reduction <add>, %144, %cst_45 [1] : vector<8x256xf32> to vector<8xf32>
    %146 = vector.shape_cast %145 : vector<8xf32> to vector<8x1xf32>
    %cst_46 = arith.constant dense<0.000000e+00> : vector<1xf32>
    %147 = vector.multi_reduction <add>, %146, %cst_46 [0] : vector<8x1xf32> to vector<1xf32>
    %148 = vector.shape_cast %147 : vector<1xf32> to vector<1x1xf32>
    %149 = vector.shape_cast %148 : vector<1x1xf32> to vector<1x1xf32>
    %150 = vector.broadcast %149 : vector<1x1xf32> to vector<8x128xf32>
    %c0_47 = arith.constant 0 : index
    %c0_48 = arith.constant 0 : index
    %c0_49 = arith.constant 0 : index
    %c0_50 = arith.constant 0 : index
    %151 = vector.load %arg6[%c0_47, %c0_48, %c0_49, %c0_50] : memref<1x1x8x128xf32, #tpu.memory_space<vmem>>, vector<1x1x8x128xf32>
    %152 = vector.shape_cast %151 : vector<1x1x8x128xf32> to vector<8x128xf32>
    %153 = vector.shape_cast %150 : vector<8x128xf32> to vector<1x1x8x128xf32>
    tpu.vector_store %arg6[%c0_47, %c0_48, %c0_49, %c0_50], %153 {strides = array<i32>} : memref<1x1x8x128xf32, #tpu.memory_space<vmem>>, vector<1x1x8x128xf32>,
    return
  }
  func.func @transform_0(%arg0: i32, %arg1: i32) -> (i32, i32) {
    %c0_i32 = arith.constant 0 : i32
    %c0_i32_0 = arith.constant 0 : i32
    %c0_i32_1 = arith.constant 0 : i32
    return %c0_i32, %c0_i32_0 : i32, i32
  }
  func.func @transform_1(%arg0: i32, %arg1: i32) -> (i32, i32, i32, i32) {
    %c0_i32 = arith.constant 0 : i32
    %c0_i32_0 = arith.constant 0 : i32
    %c0_i32_1 = arith.constant 0 : i32
    return %arg0, %arg1, %c0_i32, %c0_i32_0 : i32, i32, i32, i32
  }
  func.func @transform_2(%arg0: i32, %arg1: i32) -> (i32, i32, i32, i32) {
    %c0_i32 = arith.constant 0 : i32
    %c0_i32_0 = arith.constant 0 : i32
    %c0_i32_1 = arith.constant 0 : i32
    return %arg0, %arg1, %c0_i32, %c0_i32_0 : i32, i32, i32, i32
  }
  func.func @transform_3(%arg0: i32, %arg1: i32) -> (i32, i32, i32, i32) {
    %c1_i32 = arith.constant 1 : i32
    %0 = arith.addi %arg1, %c1_i32 : i32
    %c0_i32 = arith.constant 0 : i32
    %c0_i32_0 = arith.constant 0 : i32
    %c0_i32_1 = arith.constant 0 : i32
    return %arg0, %0, %c0_i32, %c0_i32_0 : i32, i32, i32, i32
  }
  func.func @transform_4(%arg0: i32, %arg1: i32) -> (i32, i32, i32, i32) {
    %c0_i32 = arith.constant 0 : i32
    %c0_i32_0 = arith.constant 0 : i32
    %c0_i32_1 = arith.constant 0 : i32
    return %arg0, %arg1, %c0_i32, %c0_i32_0 : i32, i32, i32, i32
  }
}

</mosaic_0001>

<llo_original>
// kernel: tpu_custom_call.1
$region0: #{tpu_custom_call.1}
  #allocation0 [shape = 'u32[]', space=smem, size = 0x4, offset = 0x4, fixed_abs, tag = 'smem constant byte address 0x4 - core index']
  #allocation1 [shape = 'u32[144,128]{1,0:T(1,128)}', space=vmem, size = 0x12000, scoped, tag = 'internal scratch']
  %s0 = inlined_call_operand.hbm [shape: f32[2,256], index: 0, kind: input, shape index: {}]
  %s1 = inlined_call_operand.hbm [shape: f32[2,2,2,256], index: 1, kind: input, shape index: {}]
  %s2 = inlined_call_operand.hbm [shape: f32[2,3,8,256], index: 2, kind: input, shape index: {}]
  %s3 = inlined_call_operand.hbm [shape: f32[2,3,8,256], index: 3, kind: input, shape index: {}]
  %s4 = inlined_call_operand.hbm [shape: f32[2,2,8,128], index: 4, kind: output, shape index: {}]
  %s5 = sld [smem:[#allocation0]]
  $region65: #{tpu_custom_call.1} parent=0
    _
  %s7 = ssub.s32 1, %s5
  %s8 = scalar_select 0, %s7, %s5
  $region1: #{tpu_custom_call.1} parent=0
    #allocation2 [shape = 'u8[2048]{0}', space=vmem, size = 0x800, scoped, tag = 'input window, operand 0, single buffered']
    #allocation3 [shape = 's32[2]{0}', space=sflag, size = 0x8, scoped, tag = 'scoped memory for tpu_custom_call.1']
    #allocation4 [shape = 's32[2]{0}', space=sflag, size = 0x8, scoped, tag = 'scoped memory for tpu_custom_call.1']
    #allocation5 [shape = 'u8[4096]{0}', space=vmem, size = 0x1000, scoped, tag = 'input window, operand 1']
    #allocation6 [shape = 's32[2]{0}', space=sflag, size = 0x8, scoped, tag = 'scoped memory for tpu_custom_call.1']
    #allocation7 [shape = 'u8[16384]{0}', space=vmem, size = 0x4000, scoped, tag = 'input window, operand 2']
    #allocation8 [shape = 'u8[16384]{0}', space=vmem, size = 0x4000, scoped, tag = 'input window, operand 3']
    #allocation9 [shape = 's32[2]{0}', space=sflag, size = 0x8, scoped, tag = 'scoped memory for tpu_custom_call.1']
    #allocation10 [shape = 'u8[8192]{0}', space=vmem, size = 0x2000, scoped, tag = 'output window, operand 0']
    %9 = vsyncpa [#allocation3], 0
    %10 = vsyncpa [#allocation6], 0
    %s11 = scalar_lea.sflag [#allocation6], 1
    %12 = vsyncpa %s11, 0
    %13 = vsyncpa [#allocation9], 0
    %s14 = scalar_lea.sflag [#allocation9], 1
    %15 = vsyncpa %s14, 0
    %16 = vsyncpa [#allocation4], 0
    %s17 = scalar_lea.sflag [#allocation4], 1
    %18 = vsyncpa %s17, 0
    loop: start=0, step=1, limit=6
    $region2: #{tpu_custom_call.1} parent=1 // loop_pre_header
      _
    $region3: #{tpu_custom_call.1} parent=1 // loop_header
      %s20 = sphi 0, %s24
      %p21 = scmp.ge.s32.totalorder %s20, 6
      %s27 = sphi 0, %s39
      %s28 = sphi 0, %s35
      %s29 = sphi 0, %s27
      %s30 = sphi 0, %s28
      %s31 = sphi 0, %s29
      %s32 = sphi 0, %s30
      %s40 = sphi 0, %s40
      %s42 = sphi 0, %s40
      %s43 = sphi 0, %s42
      %s57 = sphi 0, %s43
      %s65 = sphi 0, %s67
      %s68 = sphi 0, %s65
      %s69 = sphi 0, %s68
      %s85 = sphi 0, %s69
      %s93 = sphi 0, %s95
      %s96 = sphi 0, %s93
      %s97 = sphi 0, %s96
      %s113 = sphi 0, %s97
      %s123 = sphi 0, %s125
      %s126 = sphi 0, %s123
      %s127 = sphi 0, %s126
      %s143 = sphi 0, %s127
      %s151 = sphi 0, %s153
      %s154 = sphi 0, %s151
      %s155 = sphi 0, %s154
      %s171 = sphi 0, %s155
    $region4: #{tpu_custom_call.1} parent=1 // loop_header_branch
      %23 = sbr.rel (%p21) target = $region8
    $region5: #{tpu_custom_call.1} parent=1 // loop_body
      %s25 = ssub.s32 %s20, 1
      %s26 = ssub.s32 %s20, 2
      %s33 = sadd.s32 1, %s28
      %p34 = scmp.ge.s32.totalorder %s33, 2
      %s35 = scalar_select %p34, 0, %s33
      %s36 = sadd.s32 1, %s27
      %s37 = scalar_select %p34, %s36, %s27
      %p38 = scmp.ge.s32.totalorder %s37, 2
      %s39 = scalar_select %p38, 0, %s37
      %s41 = sadd.s32 %s40, 1
      %p44 = scmp.eq.s32.totalorder %s20, 3
      %p45 = scmp.ne.s32.totalorder %s40, %s42
      %p46 = scmp.eq.s32.totalorder %s20, 0
      %p47 = por %p45, %p46
      %p48 = scmp.ne.s32.totalorder %s40, %s42
      %p49 = scmp.eq.s32.totalorder %s25, 3
      %p50 = por %p48, %p49
      %p51 = scmp.ne.s32.totalorder %s42, %s43
      %p52 = scmp.eq.s32.totalorder %s25, 0
      %p53 = por %p51, %p52
      %p54 = scmp.ne.s32.totalorder %s42, %s43
      %p55 = scmp.eq.s32.totalorder %s26, 3
      %p56 = por %p54, %p55
      %p58 = scmp.ne.s32.totalorder %s43, %s57
      %p59 = scmp.eq.s32.totalorder %s26, 0
      %p60 = por %p58, %p59
      %s61 = ssub.s32 %s27, %s39
      %s62 = ssub.s32 %s28, %s35
      %s63 = sor.u32 %s61, %s62
      %p64 = scmp.eq.s32.totalorder %s63, 0
      %s66 = sadd.s32 %s65, 1
      %s67 = scalar_select %p64, %s65, %s66
      %p70 = pneg %p64
      %p71 = scmp.eq.s32.totalorder %s20, 3
      %p72 = por %p70, %p71
      %p73 = scmp.ne.s32.totalorder %s65, %s68
      %p74 = scmp.eq.s32.totalorder %s20, 0
      %p75 = por %p73, %p74
      %p76 = scmp.ne.s32.totalorder %s65, %s68
      %p77 = scmp.eq.s32.totalorder %s25, 3
      %p78 = por %p76, %p77
      %p79 = scmp.ne.s32.totalorder %s68, %s69
      %p80 = scmp.eq.s32.totalorder %s25, 0
      %p81 = por %p79, %p80
      %p82 = scmp.ne.s32.totalorder %s68, %s69
      %p83 = scmp.eq.s32.totalorder %s26, 3
      %p84 = por %p82, %p83
      %p86 = scmp.ne.s32.totalorder %s69, %s85
      %p87 = scmp.eq.s32.totalorder %s26, 0
      %p88 = por %p86, %p87
      %s89 = ssub.s32 %s27, %s39
      %s90 = ssub.s32 %s28, %s35
      %s91 = sor.u32 %s89, %s90
      %p92 = scmp.eq.s32.totalorder %s91, 0
      %s94 = sadd.s32 %s93, 1
      %s95 = scalar_select %p92, %s93, %s94
      %p98 = pneg %p92
      %p99 = scmp.eq.s32.totalorder %s20, 3
      %p100 = por %p98, %p99
      %p101 = scmp.ne.s32.totalorder %s93, %s96
      %p102 = scmp.eq.s32.totalorder %s20, 0
      %p103 = por %p101, %p102
      %p104 = scmp.ne.s32.totalorder %s93, %s96
      %p105 = scmp.eq.s32.totalorder %s25, 3
      %p106 = por %p104, %p105
      %p107 = scmp.ne.s32.totalorder %s96, %s97
      %p108 = scmp.eq.s32.totalorder %s25, 0
      %p109 = por %p107, %p108
      %p110 = scmp.ne.s32.totalorder %s96, %s97
      %p111 = scmp.eq.s32.totalorder %s26, 3
      %p112 = por %p110, %p111
      %p114 = scmp.ne.s32.totalorder %s97, %s113
      %p115 = scmp.eq.s32.totalorder %s26, 0
      %p116 = por %p114, %p115
      %s117 = sadd.s32 %s28, 1
      %s118 = sadd.s32 %s35, 1
      %s119 = ssub.s32 %s27, %s39
      %s120 = ssub.s32 %s117, %s118
      %s121 = sor.u32 %s119, %s120
      %p122 = scmp.eq.s32.totalorder %s121, 0
      %s124 = sadd.s32 %s123, 1
      %s125 = scalar_select %p122, %s123, %s124
      %p128 = pneg %p122
      %p129 = scmp.eq.s32.totalorder %s20, 3
      %p130 = por %p128, %p129
      %p131 = scmp.ne.s32.totalorder %s123, %s126
      %p132 = scmp.eq.s32.totalorder %s20, 0
      %p133 = por %p131, %p132
      %p134 = scmp.ne.s32.totalorder %s123, %s126
      %p135 = scmp.eq.s32.totalorder %s25, 3
      %p136 = por %p134, %p135
      %p137 = scmp.ne.s32.totalorder %s126, %s127
      %p138 = scmp.eq.s32.totalorder %s25, 0
      %p139 = por %p137, %p138
      %p140 = scmp.ne.s32.totalorder %s126, %s127
      %p141 = scmp.eq.s32.totalorder %s26, 3
      %p142 = por %p140, %p141
      %p144 = scmp.ne.s32.totalorder %s127, %s143
      %p145 = scmp.eq.s32.totalorder %s26, 0
      %p146 = por %p144, %p145
      %s147 = ssub.s32 %s27, %s39
      %s148 = ssub.s32 %s28, %s35
      %s149 = sor.u32 %s147, %s148
      %p150 = scmp.eq.s32.totalorder %s149, 0
      %s152 = sadd.s32 %s151, 1
      %s153 = scalar_select %p150, %s151, %s152
      %p156 = pneg %p150
      %p157 = scmp.eq.s32.totalorder %s20, 3
      %p158 = por %p156, %p157
      %p159 = scmp.ne.s32.totalorder %s151, %s154
      %p160 = scmp.eq.s32.totalorder %s20, 0
      %p161 = por %p159, %p160
      %p162 = scmp.ne.s32.totalorder %s151, %s154
      %p163 = scmp.eq.s32.totalorder %s25, 3
      %p164 = por %p162, %p163
      %p165 = scmp.ne.s32.totalorder %s154, %s155
      %p166 = scmp.eq.s32.totalorder %s25, 0
      %p167 = por %p165, %p166
      %p168 = scmp.ne.s32.totalorder %s154, %s155
      %p169 = scmp.eq.s32.totalorder %s26, 3
      %p170 = por %p168, %p169
      %p172 = scmp.ne.s32.totalorder %s155, %s171
      %p173 = scmp.eq.s32.totalorder %s26, 0
      %p174 = por %p172, %p173
      %p175 = scmp.le.s32.totalorder 1, %s20
      %p176 = scmp.lt.s32.totalorder %s20, 5
      %p177 = pnand %p175, %p176
      %p178 = pneg %p177
      // Predicated region
      $region9: #{tpu_custom_call.1} parent=5 // pred_check
        _
      $region10: #{tpu_custom_call.1} parent=5 // pred_check_branch
        %180 = sbr.rel (%p177) target = $region12
      $region11: #{tpu_custom_call.1} parent=5 // pred_region
        %s181 = ssub.s32 %s20, 1
        // Predicated region
        $region13: #{tpu_custom_call.1} parent=11 // pred_check
          %p182 = pneg %p53
        $region14: #{tpu_custom_call.1} parent=11 // pred_check_branch
          %184 = sbr.rel (%p182) target = $region16
        $region15: #{tpu_custom_call.1} parent=11 // pred_region
          %s186 = ssub.s32 64, 64
          %187 = vsyncadd [#allocation3], %s186
          %s189 = sshll.u32 [#allocation2], 4
          %s190 = int_to_ptr.vmem [resolvable:$true] %s189
          %192 = dma.hbm_to_vmem [thread:$0]  %s0, 64, %s190, [#allocation3]
        $region16: #{tpu_custom_call.1} parent=11 // pred_fallthru
          _
      $region12: #{tpu_custom_call.1} parent=5 // pred_fallthru
        _
      %p193 = scmp.lt.s32.totalorder %s20, 4
      // Predicated region
      $region17: #{tpu_custom_call.1} parent=5 // pred_check
        %p194 = pneg %p193
      $region18: #{tpu_custom_call.1} parent=5 // pred_check_branch
        %196 = sbr.rel (%p194) target = $region20
      $region19: #{tpu_custom_call.1} parent=5 // pred_region
        // Predicated region
        $region21: #{tpu_custom_call.1} parent=19 // pred_check
          %p197 = pneg %p75
        $region22: #{tpu_custom_call.1} parent=19 // pred_check_branch
          %199 = sbr.rel (%p197) target = $region24
        $region23: #{tpu_custom_call.1} parent=19 // pred_region
          %s200 = sand.u32 %s20, 1
          %s201 = scalar_lea.sflag [#allocation6], %s200
          %s202 = sand.u32 %s65, 1
          %s203 = smul.addr %s202, 4
          %s204 = scalar_lea.vmem [#allocation5], %s203
          %s206 = ssub.s32 64, 64
          %207 = vsyncadd %s201, %s206
          %s208 = smul.addr %s28, 2
          %s209 = smul.addr %s27, 4
          %s210 = sadd.s32 %s208, %s209
          %s211 = smul.addr %s210, 32
          %s212 = scalar_lea.hbm %s1, %s211
          %s214 = sshll.u32 %s204, 4
          %s215 = int_to_ptr.vmem [resolvable:$true] %s214
          %217 = dma.hbm_to_vmem [thread:$0]  %s212, 64, %s215, %s201
        $region24: #{tpu_custom_call.1} parent=19 // pred_fallthru
          _
        // Predicated region
        $region25: #{tpu_custom_call.1} parent=19 // pred_check
          %p218 = pneg %p103
        $region26: #{tpu_custom_call.1} parent=19 // pred_check_branch
          %220 = sbr.rel (%p218) target = $region28
        $region27: #{tpu_custom_call.1} parent=19 // pred_region
          %s221 = sand.u32 %s20, 1
          %s222 = scalar_lea.sflag [#allocation6], %s221
          %s223 = sand.u32 %s93, 1
          %s224 = smul.addr %s223, 16
          %s225 = scalar_lea.vmem [#allocation7], %s224
          %s227 = ssub.s32 256, 256
          %228 = vsyncadd %s222, %s227
          %s229 = smul.addr %s28, 2
          %s230 = smul.addr %s27, 6
          %s231 = sadd.s32 %s229, %s230
          %s232 = smul.addr %s231, 128
          %s233 = scalar_lea.hbm %s2, %s232
          %s235 = sshll.u32 %s225, 4
          %s236 = int_to_ptr.vmem [resolvable:$true] %s235
          %238 = dma.hbm_to_vmem [thread:$0]  %s233, 256, %s236, %s222
        $region28: #{tpu_custom_call.1} parent=19 // pred_fallthru
          _
        // Predicated region
        $region29: #{tpu_custom_call.1} parent=19 // pred_check
          %p239 = pneg %p133
        $region30: #{tpu_custom_call.1} parent=19 // pred_check_branch
          %241 = sbr.rel (%p239) target = $region32
        $region31: #{tpu_custom_call.1} parent=19 // pred_region
          %s242 = sand.u32 %s123, 1
          %s243 = scalar_lea.sflag [#allocation9], %s242
          %s244 = sand.u32 %s123, 1
          %s245 = smul.addr %s244, 16
          %s246 = scalar_lea.vmem [#allocation8], %s245
          %s247 = sadd.s32 %s28, 1
          %s249 = ssub.s32 256, 256
          %250 = vsyncadd %s243, %s249
          %s251 = smul.addr %s247, 2
          %s252 = smul.addr %s27, 6
          %s253 = sadd.s32 %s251, %s252
          %s254 = smul.addr %s253, 128
          %s255 = scalar_lea.hbm %s3, %s254
          %s257 = sshll.u32 %s246, 4
          %s258 = int_to_ptr.vmem [resolvable:$true] %s257
          %260 = dma.hbm_to_vmem [thread:$0]  %s255, 256, %s258, %s243
        $region32: #{tpu_custom_call.1} parent=19 // pred_fallthru
          _
      $region20: #{tpu_custom_call.1} parent=5 // pred_fallthru
        _
      %p261 = scmp.le.s32.totalorder 1, %s20
      %p262 = scmp.lt.s32.totalorder %s20, 5
      %p263 = pnand %p261, %p262
      %p264 = pneg %p263
      // Predicated region
      $region33: #{tpu_custom_call.1} parent=5 // pred_check
        _
      $region34: #{tpu_custom_call.1} parent=5 // pred_check_branch
        %266 = sbr.rel (%p263) target = $region36
      $region35: #{tpu_custom_call.1} parent=5 // pred_region
        %s267 = ssub.s32 %s20, 1
        // Predicated region
        $region37: #{tpu_custom_call.1} parent=35 // pred_check
          %p268 = pneg %p53
        $region38: #{tpu_custom_call.1} parent=35 // pred_check_branch
          %270 = sbr.rel (%p268) target = $region40
        $region39: #{tpu_custom_call.1} parent=35 // pred_region
          %271 = dma.done [#allocation3], 64
        $region40: #{tpu_custom_call.1} parent=35 // pred_fallthru
          _
        %s272 = sand.u32 %s25, 1
        %s273 = scalar_lea.sflag [#allocation6], %s272
        %s274 = sand.u32 %s68, 1
        %s275 = smul.addr %s274, 4
        %s276 = scalar_lea.vmem [#allocation5], %s275
        // Predicated region
        $region41: #{tpu_custom_call.1} parent=35 // pred_check
          %p277 = pneg %p81
        $region42: #{tpu_custom_call.1} parent=35 // pred_check_branch
          %279 = sbr.rel (%p277) target = $region44
        $region43: #{tpu_custom_call.1} parent=35 // pred_region
          %280 = dma.done %s273, 64
        $region44: #{tpu_custom_call.1} parent=35 // pred_fallthru
          _
        %s281 = sand.u32 %s25, 1
        %s282 = scalar_lea.sflag [#allocation6], %s281
        %s283 = sand.u32 %s96, 1
        %s284 = smul.addr %s283, 16
        %s285 = scalar_lea.vmem [#allocation7], %s284
        // Predicated region
        $region45: #{tpu_custom_call.1} parent=35 // pred_check
          %p286 = pneg %p109
        $region46: #{tpu_custom_call.1} parent=35 // pred_check_branch
          %288 = sbr.rel (%p286) target = $region48
        $region47: #{tpu_custom_call.1} parent=35 // pred_region
          %289 = dma.done %s282, 256
        $region48: #{tpu_custom_call.1} parent=35 // pred_fallthru
          _
        %s290 = sand.u32 %s126, 1
        %s291 = scalar_lea.sflag [#allocation9], %s290
        %s292 = sand.u32 %s126, 1
        %s293 = smul.addr %s292, 16
        %s294 = scalar_lea.vmem [#allocation8], %s293
        // Predicated region
        $region49: #{tpu_custom_call.1} parent=35 // pred_check
          %p295 = pneg %p139
        $region50: #{tpu_custom_call.1} parent=35 // pred_check_branch
          %297 = sbr.rel (%p295) target = $region52
        $region51: #{tpu_custom_call.1} parent=35 // pred_region
          %298 = dma.done %s291, 256
        $region52: #{tpu_custom_call.1} parent=35 // pred_fallthru
          _
        %p299 = pneg %p53
        %p300 = pneg %p50
        %s301 = sand.u32 %s25, 1
        %s302 = scalar_lea.sflag [#allocation6], %s301
        %s303 = sand.u32 %s68, 1
        %s304 = smul.addr %s303, 4
        %s305 = scalar_lea.vmem [#allocation5], %s304
        %p306 = pneg %p81
        %p307 = pneg %p78
        %s308 = sand.u32 %s25, 1
        %s309 = scalar_lea.sflag [#allocation6], %s308
        %s310 = sand.u32 %s96, 1
        %s311 = smul.addr %s310, 16
        %s312 = scalar_lea.vmem [#allocation7], %s311
        %p313 = pneg %p109
        %p314 = pneg %p106
        %s315 = sand.u32 %s126, 1
        %s316 = scalar_lea.sflag [#allocation9], %s315
        %s317 = sand.u32 %s126, 1
        %s318 = smul.addr %s317, 16
        %s319 = scalar_lea.vmem [#allocation8], %s318
        %p320 = pneg %p139
        %p321 = pneg %p136
        %p322 = pneg %p167
        %p323 = pneg %p164
        %s324 = sand.u32 %s154, 1
        %s325 = scalar_lea.sflag [#allocation4], %s324
        %s326 = sand.u32 %s154, 1
        %s327 = smul.addr %s326, 8
        %s328 = scalar_lea.vmem [#allocation10], %s327
        %s329 = sadd.s32 %s30, 1
        %v330 = vld [vmem:[%s276] ss:$2 sm:$0x3]
        %s331 = scalar_lea.vmem %s276, 1 [#allocation5]
        %v332 = vld [vmem:[%s331] ss:$2 sm:$0x3]
        %v333 = vld [vmem:[#allocation2] ss:$2 sm:$0x3]
        %v334 = vmul.f32 %v330, 1.0666667
        %v335 = vadd.f32 %v333, %v334
        %s336 = scalar_lea.vmem [#allocation2], 1
        %v337 = vld [vmem:[%s336] ss:$2 sm:$0x3]
        %v338 = vmul.f32 %v332, 1.0666667
        %v339 = vadd.f32 %v337, %v338
        %v340 = vfloor.f32 %v335
        %v341 = vfloor.f32 %v339
        %v342 = vsub.f32 %v335, %v340
        %v343 = vsub.f32 1.0, %v342
        %v344 = vsub.f32 %v339, %v341
        %v345 = vsub.f32 1.0, %v344
        %v346 = vcvt.f32.s32.to.zero.pseudo %v340
        %v347 = vcvt.f32.s32.to.zero.pseudo %v341
        %v348 = vadd.s32 %v346, 1
        %v349 = vadd.s32 %v347, 1
        %v350 = vmul.f32 %v345, %v343
        %vm351 = vcmp.ge.s32.totalorder %v347, 0
        %vm352 = vcmp.lt.s32.totalorder %v347, 16
        %vm353 = vmand %vm351, %vm352
        %v354 = vsel %vm353, 1, 0
        %v355 = vcvt.s32.f32 %v354
        %v356 = vmul.f32 %v350, %v355
        %vm357 = vcmp.ge.s32.totalorder %v346, 0
        %vm358 = vcmp.lt.s32.totalorder %v346, 16
        %vm359 = vmand %vm357, %vm358
        %v360 = vsel %vm359, 1, 0
        %v361 = vcvt.s32.f32 %v360
        %v362 = vmul.f32 %v356, %v361
        %v363 = vmul.f32 %v345, %v342
        %v364 = vmul.f32 %v363, %v355
        %vm365 = vcmp.ge.s32.totalorder %v348, 0
        %vm366 = vcmp.lt.s32.totalorder %v348, 16
        %vm367 = vmand %vm365, %vm366
        %v368 = vsel %vm367, 1, 0
        %v369 = vcvt.s32.f32 %v368
        %v370 = vmul.f32 %v364, %v369
        %v371 = vmul.f32 %v344, %v343
        %vm372 = vcmp.ge.s32.totalorder %v349, 0
        %vm373 = vcmp.lt.s32.totalorder %v349, 16
        %vm374 = vmand %vm372, %vm373
        %v375 = vsel %vm374, 1, 0
        %v376 = vcvt.s32.f32 %v375
        %v377 = vmul.f32 %v371, %v376
        %v378 = vmul.f32 %v377, %v361
        %v379 = vmul.f32 %v344, %v342
        %v380 = vmul.f32 %v379, %v376
        %v381 = vmul.f32 %v380, %v369
        %v382 = vmul.u32 %v347, 16
        %v383 = vadd.s32 %v382, %v346
        %v384 = vld [vmem:[%s294] sm:$0xff]
        %v385 = vld [vmem:[%s294 + $0x8] sm:$0xff]
        %v386 = vlaneseq
        %v387 = vshrl.u32 %v386, 7
        %v388 = vadd.s32 %v387, 8
        %v389 = vadd.s32 %v387, 16
        %v390 = vadd.s32 %v387, 24
        %v391 = vadd.s32 %v387, 32
        %v392 = vadd.s32 %v387, 40
        %v393 = vadd.s32 %v387, 48
        %v394 = vadd.s32 %v387, 56
        %v395 = vadd.s32 %v387, 64
        %v396 = vadd.s32 %v387, 72
        %v397 = vadd.s32 %v387, 80
        %v398 = vadd.s32 %v387, 88
        %v399 = vadd.s32 %v387, 96
        %v400 = vadd.s32 %v387, 104
        %v401 = vadd.s32 %v387, 112
        %v402 = vadd.s32 %v387, 120
        %v403 = vadd.s32 %v387, 128
        %v404 = vadd.s32 %v387, 136
        %v405 = vadd.s32 %v387, 144
        %v406 = vadd.s32 %v387, 152
        %v407 = vadd.s32 %v387, 160
        %v408 = vadd.s32 %v387, 168
        %v409 = vadd.s32 %v387, 176
        %v410 = vadd.s32 %v387, 184
        %v411 = vadd.s32 %v387, 192
        %v412 = vadd.s32 %v387, 200
        %v413 = vadd.s32 %v387, 208
        %v414 = vadd.s32 %v387, 216
        %v415 = vadd.s32 %v387, 224
        %v416 = vadd.s32 %v387, 232
        %v417 = vadd.s32 %v387, 240
        %v418 = vadd.s32 %v387, 248
        %v419 = vstv 0
        %v420 = vadd.s32 %v387, %v419
        %v421 = vadd.s32 %v388, %v419
        %v422 = vadd.s32 %v389, %v419
        %v423 = vadd.s32 %v390, %v419
        %v424 = vadd.s32 %v391, %v419
        %v425 = vadd.s32 %v392, %v419
        %v426 = vadd.s32 %v393, %v419
        %v427 = vadd.s32 %v394, %v419
        %v428 = vadd.s32 %v395, %v419
        %v429 = vadd.s32 %v396, %v419
        %v430 = vadd.s32 %v397, %v419
        %v431 = vadd.s32 %v398, %v419
        %v432 = vadd.s32 %v399, %v419
        %v433 = vadd.s32 %v400, %v419
        %v434 = vadd.s32 %v401, %v419
        %v435 = vadd.s32 %v402, %v419
        %v436 = vadd.s32 %v403, %v419
        %v437 = vadd.s32 %v404, %v419
        %v438 = vadd.s32 %v405, %v419
        %v439 = vadd.s32 %v406, %v419
        %v440 = vadd.s32 %v407, %v419
        %v441 = vadd.s32 %v408, %v419
        %v442 = vadd.s32 %v409, %v419
        %v443 = vadd.s32 %v410, %v419
        %v444 = vadd.s32 %v411, %v419
        %v445 = vadd.s32 %v412, %v419
        %v446 = vadd.s32 %v413, %v419
        %v447 = vadd.s32 %v414, %v419
        %v448 = vadd.s32 %v415, %v419
        %v449 = vadd.s32 %v416, %v419
        %v450 = vadd.s32 %v417, %v419
        %v451 = vadd.s32 %v418, %v419
        %v452 = vlaneseq
        %v453 = vshrl.u32 %v452, 7
        %v454 = vsub.s32 0, %v453
        %v455 = vrot.slane %v383, %v454
        %v456 = vlaneseq
        %v457 = vshrl.u32 %v456, 7
        %v458 = vsub.s32 1, %v457
        %v459 = vrot.slane %v383, %v458
        %v460 = vsub.s32 %v420, %v455
        %v461 = vsub.s32 %v420, %v459
        %v462 = vsub.s32 %v421, %v455
        %v463 = vsub.s32 %v421, %v459
        %v464 = vsub.s32 %v422, %v455
        %v465 = vsub.s32 %v422, %v459
        %v466 = vsub.s32 %v423, %v455
        %v467 = vsub.s32 %v423, %v459
        %v468 = vsub.s32 %v424, %v455
        %v469 = vsub.s32 %v424, %v459
        %v470 = vsub.s32 %v425, %v455
        %v471 = vsub.s32 %v425, %v459
        %v472 = vsub.s32 %v426, %v455
        %v473 = vsub.s32 %v426, %v459
        %v474 = vsub.s32 %v427, %v455
        %v475 = vsub.s32 %v427, %v459
        %v476 = vsub.s32 %v428, %v455
        %v477 = vsub.s32 %v428, %v459
        %v478 = vsub.s32 %v429, %v455
        %v479 = vsub.s32 %v429, %v459
        %v480 = vsub.s32 %v430, %v455
        %v481 = vsub.s32 %v430, %v459
        %v482 = vsub.s32 %v431, %v455
        %v483 = vsub.s32 %v431, %v459
        %v484 = vsub.s32 %v432, %v455
        %v485 = vsub.s32 %v432, %v459
        %v486 = vsub.s32 %v433, %v455
        %v487 = vsub.s32 %v433, %v459
        %v488 = vsub.s32 %v434, %v455
        %v489 = vsub.s32 %v434, %v459
        %v490 = vsub.s32 %v435, %v455
        %v491 = vsub.s32 %v435, %v459
        %v492 = vsub.s32 %v436, %v455
        %v493 = vsub.s32 %v436, %v459
        %v494 = vsub.s32 %v437, %v455
        %v495 = vsub.s32 %v437, %v459
        %v496 = vsub.s32 %v438, %v455
        %v497 = vsub.s32 %v438, %v459
        %v498 = vsub.s32 %v439, %v455
        %v499 = vsub.s32 %v439, %v459
        %v500 = vsub.s32 %v440, %v455
        %v501 = vsub.s32 %v440, %v459
        %v502 = vsub.s32 %v441, %v455
        %v503 = vsub.s32 %v441, %v459
        %v504 = vsub.s32 %v442, %v455
        %v505 = vsub.s32 %v442, %v459
        %v506 = vsub.s32 %v443, %v455
        %v507 = vsub.s32 %v443, %v459
        %v508 = vsub.s32 %v444, %v455
        %v509 = vsub.s32 %v444, %v459
        %v510 = vsub.s32 %v445, %v455
        %v511 = vsub.s32 %v445, %v459
        %v512 = vsub.s32 %v446, %v455
        %v513 = vsub.s32 %v446, %v459
        %v514 = vsub.s32 %v447, %v455
        %v515 = vsub.s32 %v447, %v459
        %v516 = vsub.s32 %v448, %v455
        %v517 = vsub.s32 %v448, %v459
        %v518 = vsub.s32 %v449, %v455
        %v519 = vsub.s32 %v449, %v459
        %v520 = vsub.s32 %v450, %v455
        %v521 = vsub.s32 %v450, %v459
        %v522 = vsub.s32 %v451, %v455
        %v523 = vsub.s32 %v451, %v459
        %vm524 = vcmp.eq.s32.totalorder %v460, 0
        %vm525 = vcmp.eq.s32.totalorder %v461, 0
        %vm526 = vcmp.eq.s32.totalorder %v462, 0
        %vm527 = vcmp.eq.s32.totalorder %v463, 0
        %vm528 = vcmp.eq.s32.totalorder %v464, 0
        %vm529 = vcmp.eq.s32.totalorder %v465, 0
        %vm530 = vcmp.eq.s32.totalorder %v466, 0
        %vm531 = vcmp.eq.s32.totalorder %v467, 0
        %vm532 = vcmp.eq.s32.totalorder %v468, 0
        %vm533 = vcmp.eq.s32.totalorder %v469, 0
        %vm534 = vcmp.eq.s32.totalorder %v470, 0
        %vm535 = vcmp.eq.s32.totalorder %v471, 0
        %vm536 = vcmp.eq.s32.totalorder %v472, 0
        %vm537 = vcmp.eq.s32.totalorder %v473, 0
        %vm538 = vcmp.eq.s32.totalorder %v474, 0
        %vm539 = vcmp.eq.s32.totalorder %v475, 0
        %vm540 = vcmp.eq.s32.totalorder %v476, 0
        %vm541 = vcmp.eq.s32.totalorder %v477, 0
        %vm542 = vcmp.eq.s32.totalorder %v478, 0
        %vm543 = vcmp.eq.s32.totalorder %v479, 0
        %vm544 = vcmp.eq.s32.totalorder %v480, 0
        %vm545 = vcmp.eq.s32.totalorder %v481, 0
        %vm546 = vcmp.eq.s32.totalorder %v482, 0
        %vm547 = vcmp.eq.s32.totalorder %v483, 0
        %vm548 = vcmp.eq.s32.totalorder %v484, 0
        %vm549 = vcmp.eq.s32.totalorder %v485, 0
        %vm550 = vcmp.eq.s32.totalorder %v486, 0
        %vm551 = vcmp.eq.s32.totalorder %v487, 0
        %vm552 = vcmp.eq.s32.totalorder %v488, 0
        %vm553 = vcmp.eq.s32.totalorder %v489, 0
        %vm554 = vcmp.eq.s32.totalorder %v490, 0
        %vm555 = vcmp.eq.s32.totalorder %v491, 0
        %vm556 = vcmp.eq.s32.totalorder %v492, 0
        %vm557 = vcmp.eq.s32.totalorder %v493, 0
        %vm558 = vcmp.eq.s32.totalorder %v494, 0
        %vm559 = vcmp.eq.s32.totalorder %v495, 0
        %vm560 = vcmp.eq.s32.totalorder %v496, 0
        %vm561 = vcmp.eq.s32.totalorder %v497, 0
        %vm562 = vcmp.eq.s32.totalorder %v498, 0
        %vm563 = vcmp.eq.s32.totalorder %v499, 0
        %vm564 = vcmp.eq.s32.totalorder %v500, 0
        %vm565 = vcmp.eq.s32.totalorder %v501, 0
        %vm566 = vcmp.eq.s32.totalorder %v502, 0
        %vm567 = vcmp.eq.s32.totalorder %v503, 0
        %vm568 = vcmp.eq.s32.totalorder %v504, 0
        %vm569 = vcmp.eq.s32.totalorder %v505, 0
        %vm570 = vcmp.eq.s32.totalorder %v506, 0
        %vm571 = vcmp.eq.s32.totalorder %v507, 0
        %vm572 = vcmp.eq.s32.totalorder %v508, 0
        %vm573 = vcmp.eq.s32.totalorder %v509, 0
        %vm574 = vcmp.eq.s32.totalorder %v510, 0
        %vm575 = vcmp.eq.s32.totalorder %v511, 0
        %vm576 = vcmp.eq.s32.totalorder %v512, 0
        %vm577 = vcmp.eq.s32.totalorder %v513, 0
        %vm578 = vcmp.eq.s32.totalorder %v514, 0
        %vm579 = vcmp.eq.s32.totalorder %v515, 0
        %vm580 = vcmp.eq.s32.totalorder %v516, 0
        %vm581 = vcmp.eq.s32.totalorder %v517, 0
        %vm582 = vcmp.eq.s32.totalorder %v518, 0
        %vm583 = vcmp.eq.s32.totalorder %v519, 0
        %vm584 = vcmp.eq.s32.totalorder %v520, 0
        %vm585 = vcmp.eq.s32.totalorder %v521, 0
        %vm586 = vcmp.eq.s32.totalorder %v522, 0
        %vm587 = vcmp.eq.s32.totalorder %v523, 0
        %v589 = vlaneseq
        %v590 = vshrl.u32 %v589, 7
        %v591 = vsub.s32 0, %v590
        %v592 = vrot.slane %v362, %v591
        %v593 = vlaneseq
        %v594 = vshrl.u32 %v593, 7
        %v595 = vsub.s32 1, %v594
        %v596 = vrot.slane %v362, %v595
        %v599 = vsel %vm524, %v592, 0.0
        %v600 = vsel %vm525, %v596, 0.0
        %v601 = vsel %vm526, %v592, 0.0
        %v602 = vsel %vm527, %v596, 0.0
        %v603 = vsel %vm528, %v592, 0.0
        %v604 = vsel %vm529, %v596, 0.0
        %v605 = vsel %vm530, %v592, 0.0
        %v606 = vsel %vm531, %v596, 0.0
        %v607 = vsel %vm532, %v592, 0.0
        %v608 = vsel %vm533, %v596, 0.0
        %v609 = vsel %vm534, %v592, 0.0
        %v610 = vsel %vm535, %v596, 0.0
        %v611 = vsel %vm536, %v592, 0.0
        %v612 = vsel %vm537, %v596, 0.0
        %v613 = vsel %vm538, %v592, 0.0
        %v614 = vsel %vm539, %v596, 0.0
        %v615 = vsel %vm540, %v592, 0.0
        %v616 = vsel %vm541, %v596, 0.0
        %v617 = vsel %vm542, %v592, 0.0
        %v618 = vsel %vm543, %v596, 0.0
        %v619 = vsel %vm544, %v592, 0.0
        %v620 = vsel %vm545, %v596, 0.0
        %v621 = vsel %vm546, %v592, 0.0
        %v622 = vsel %vm547, %v596, 0.0
        %v623 = vsel %vm548, %v592, 0.0
        %v624 = vsel %vm549, %v596, 0.0
        %v625 = vsel %vm550, %v592, 0.0
        %v626 = vsel %vm551, %v596, 0.0
        %v627 = vsel %vm552, %v592, 0.0
        %v628 = vsel %vm553, %v596, 0.0
        %v629 = vsel %vm554, %v592, 0.0
        %v630 = vsel %vm555, %v596, 0.0
        %v631 = vsel %vm556, %v592, 0.0
        %v632 = vsel %vm557, %v596, 0.0
        %v633 = vsel %vm558, %v592, 0.0
        %v634 = vsel %vm559, %v596, 0.0
        %v635 = vsel %vm560, %v592, 0.0
        %v636 = vsel %vm561, %v596, 0.0
        %v637 = vsel %vm562, %v592, 0.0
        %v638 = vsel %vm563, %v596, 0.0
        %v639 = vsel %vm564, %v592, 0.0
        %v640 = vsel %vm565, %v596, 0.0
        %v641 = vsel %vm566, %v592, 0.0
        %v642 = vsel %vm567, %v596, 0.0
        %v643 = vsel %vm568, %v592, 0.0
        %v644 = vsel %vm569, %v596, 0.0
        %v645 = vsel %vm570, %v592, 0.0
        %v646 = vsel %vm571, %v596, 0.0
        %v647 = vsel %vm572, %v592, 0.0
        %v648 = vsel %vm573, %v596, 0.0
        %v649 = vsel %vm574, %v592, 0.0
        %v650 = vsel %vm575, %v596, 0.0
        %v651 = vsel %vm576, %v592, 0.0
        %v652 = vsel %vm577, %v596, 0.0
        %v653 = vsel %vm578, %v592, 0.0
        %v654 = vsel %vm579, %v596, 0.0
        %v655 = vsel %vm580, %v592, 0.0
        %v656 = vsel %vm581, %v596, 0.0
        %v657 = vsel %vm582, %v592, 0.0
        %v658 = vsel %vm583, %v596, 0.0
        %v659 = vsel %vm584, %v592, 0.0
        %v660 = vsel %vm585, %v596, 0.0
        %v661 = vsel %vm586, %v592, 0.0
        %v662 = vsel %vm587, %v596, 0.0
        %vm663 = vcmp.eq.s32.totalorder %v460, 1
        %vm664 = vcmp.eq.s32.totalorder %v461, 1
        %vm665 = vcmp.eq.s32.totalorder %v462, 1
        %vm666 = vcmp.eq.s32.totalorder %v463, 1
        %vm667 = vcmp.eq.s32.totalorder %v464, 1
        %vm668 = vcmp.eq.s32.totalorder %v465, 1
        %vm669 = vcmp.eq.s32.totalorder %v466, 1
        %vm670 = vcmp.eq.s32.totalorder %v467, 1
        %vm671 = vcmp.eq.s32.totalorder %v468, 1
        %vm672 = vcmp.eq.s32.totalorder %v469, 1
        %vm673 = vcmp.eq.s32.totalorder %v470, 1
        %vm674 = vcmp.eq.s32.totalorder %v471, 1
        %vm675 = vcmp.eq.s32.totalorder %v472, 1
        %vm676 = vcmp.eq.s32.totalorder %v473, 1
        %vm677 = vcmp.eq.s32.totalorder %v474, 1
        %vm678 = vcmp.eq.s32.totalorder %v475, 1
        %vm679 = vcmp.eq.s32.totalorder %v476, 1
        %vm680 = vcmp.eq.s32.totalorder %v477, 1
        %vm681 = vcmp.eq.s32.totalorder %v478, 1
        %vm682 = vcmp.eq.s32.totalorder %v479, 1
        %vm683 = vcmp.eq.s32.totalorder %v480, 1
        %vm684 = vcmp.eq.s32.totalorder %v481, 1
        %vm685 = vcmp.eq.s32.totalorder %v482, 1
        %vm686 = vcmp.eq.s32.totalorder %v483, 1
        %vm687 = vcmp.eq.s32.totalorder %v484, 1
        %vm688 = vcmp.eq.s32.totalorder %v485, 1
        %vm689 = vcmp.eq.s32.totalorder %v486, 1
        %vm690 = vcmp.eq.s32.totalorder %v487, 1
        %vm691 = vcmp.eq.s32.totalorder %v488, 1
        %vm692 = vcmp.eq.s32.totalorder %v489, 1
        %vm693 = vcmp.eq.s32.totalorder %v490, 1
        %vm694 = vcmp.eq.s32.totalorder %v491, 1
        %vm695 = vcmp.eq.s32.totalorder %v492, 1
        %vm696 = vcmp.eq.s32.totalorder %v493, 1
        %vm697 = vcmp.eq.s32.totalorder %v494, 1
        %vm698 = vcmp.eq.s32.totalorder %v495, 1
        %vm699 = vcmp.eq.s32.totalorder %v496, 1
        %vm700 = vcmp.eq.s32.totalorder %v497, 1
        %vm701 = vcmp.eq.s32.totalorder %v498, 1
        %vm702 = vcmp.eq.s32.totalorder %v499, 1
        %vm703 = vcmp.eq.s32.totalorder %v500, 1
        %vm704 = vcmp.eq.s32.totalorder %v501, 1
        %vm705 = vcmp.eq.s32.totalorder %v502, 1
        %vm706 = vcmp.eq.s32.totalorder %v503, 1
        %vm707 = vcmp.eq.s32.totalorder %v504, 1
        %vm708 = vcmp.eq.s32.totalorder %v505, 1
        %vm709 = vcmp.eq.s32.totalorder %v506, 1
        %vm710 = vcmp.eq.s32.totalorder %v507, 1
        %vm711 = vcmp.eq.s32.totalorder %v508, 1
        %vm712 = vcmp.eq.s32.totalorder %v509, 1
        %vm713 = vcmp.eq.s32.totalorder %v510, 1
        %vm714 = vcmp.eq.s32.totalorder %v511, 1
        %vm715 = vcmp.eq.s32.totalorder %v512, 1
        %vm716 = vcmp.eq.s32.totalorder %v513, 1
        %vm717 = vcmp.eq.s32.totalorder %v514, 1
        %vm718 = vcmp.eq.s32.totalorder %v515, 1
        %vm719 = vcmp.eq.s32.totalorder %v516, 1
        %vm720 = vcmp.eq.s32.totalorder %v517, 1
        %vm721 = vcmp.eq.s32.totalorder %v518, 1
        %vm722 = vcmp.eq.s32.totalorder %v519, 1
        %vm723 = vcmp.eq.s32.totalorder %v520, 1
        %vm724 = vcmp.eq.s32.totalorder %v521, 1
        %vm725 = vcmp.eq.s32.totalorder %v522, 1
        %vm726 = vcmp.eq.s32.totalorder %v523, 1
        %v728 = vlaneseq
        %v729 = vshrl.u32 %v728, 7
        %v730 = vsub.s32 0, %v729
        %v731 = vrot.slane %v370, %v730
        %v732 = vlaneseq
        %v733 = vshrl.u32 %v732, 7
        %v734 = vsub.s32 1, %v733
        %v735 = vrot.slane %v370, %v734
        %v738 = vsel %vm663, %v731, %v599
        %v739 = vsel %vm664, %v735, %v600
        %v740 = vsel %vm665, %v731, %v601
        %v741 = vsel %vm666, %v735, %v602
        %v742 = vsel %vm667, %v731, %v603
        %v743 = vsel %vm668, %v735, %v604
        %v744 = vsel %vm669, %v731, %v605
        %v745 = vsel %vm670, %v735, %v606
        %v746 = vsel %vm671, %v731, %v607
        %v747 = vsel %vm672, %v735, %v608
        %v748 = vsel %vm673, %v731, %v609
        %v749 = vsel %vm674, %v735, %v610
        %v750 = vsel %vm675, %v731, %v611
        %v751 = vsel %vm676, %v735, %v612
        %v752 = vsel %vm677, %v731, %v613
        %v753 = vsel %vm678, %v735, %v614
        %v754 = vsel %vm679, %v731, %v615
        %v755 = vsel %vm680, %v735, %v616
        %v756 = vsel %vm681, %v731, %v617
        %v757 = vsel %vm682, %v735, %v618
        %v758 = vsel %vm683, %v731, %v619
        %v759 = vsel %vm684, %v735, %v620
        %v760 = vsel %vm685, %v731, %v621
        %v761 = vsel %vm686, %v735, %v622
        %v762 = vsel %vm687, %v731, %v623
        %v763 = vsel %vm688, %v735, %v624
        %v764 = vsel %vm689, %v731, %v625
        %v765 = vsel %vm690, %v735, %v626
        %v766 = vsel %vm691, %v731, %v627
        %v767 = vsel %vm692, %v735, %v628
        %v768 = vsel %vm693, %v731, %v629
        %v769 = vsel %vm694, %v735, %v630
        %v770 = vsel %vm695, %v731, %v631
        %v771 = vsel %vm696, %v735, %v632
        %v772 = vsel %vm697, %v731, %v633
        %v773 = vsel %vm698, %v735, %v634
        %v774 = vsel %vm699, %v731, %v635
        %v775 = vsel %vm700, %v735, %v636
        %v776 = vsel %vm701, %v731, %v637
        %v777 = vsel %vm702, %v735, %v638
        %v778 = vsel %vm703, %v731, %v639
        %v779 = vsel %vm704, %v735, %v640
        %v780 = vsel %vm705, %v731, %v641
        %v781 = vsel %vm706, %v735, %v642
        %v782 = vsel %vm707, %v731, %v643
        %v783 = vsel %vm708, %v735, %v644
        %v784 = vsel %vm709, %v731, %v645
        %v785 = vsel %vm710, %v735, %v646
        %v786 = vsel %vm711, %v731, %v647
        %v787 = vsel %vm712, %v735, %v648
        %v788 = vsel %vm713, %v731, %v649
        %v789 = vsel %vm714, %v735, %v650
        %v790 = vsel %vm715, %v731, %v651
        %v791 = vsel %vm716, %v735, %v652
        %v792 = vsel %vm717, %v731, %v653
        %v793 = vsel %vm718, %v735, %v654
        %v794 = vsel %vm719, %v731, %v655
        %v795 = vsel %vm720, %v735, %v656
        %v796 = vsel %vm721, %v731, %v657
        %v797 = vsel %vm722, %v735, %v658
        %v798 = vsel %vm723, %v731, %v659
        %v799 = vsel %vm724, %v735, %v660
        %v800 = vsel %vm725, %v731, %v661
        %v801 = vsel %vm726, %v735, %v662
        %vm802 = vcmp.eq.s32.totalorder %v460, 16
        %vm803 = vcmp.eq.s32.totalorder %v461, 16
        %vm804 = vcmp.eq.s32.totalorder %v462, 16
        %vm805 = vcmp.eq.s32.totalorder %v463, 16
        %vm806 = vcmp.eq.s32.totalorder %v464, 16
        %vm807 = vcmp.eq.s32.totalorder %v465, 16
        %vm808 = vcmp.eq.s32.totalorder %v466, 16
        %vm809 = vcmp.eq.s32.totalorder %v467, 16
        %vm810 = vcmp.eq.s32.totalorder %v468, 16
        %vm811 = vcmp.eq.s32.totalorder %v469, 16
        %vm812 = vcmp.eq.s32.totalorder %v470, 16
        %vm813 = vcmp.eq.s32.totalorder %v471, 16
        %vm814 = vcmp.eq.s32.totalorder %v472, 16
        %vm815 = vcmp.eq.s32.totalorder %v473, 16
        %vm816 = vcmp.eq.s32.totalorder %v474, 16
        %vm817 = vcmp.eq.s32.totalorder %v475, 16
        %vm818 = vcmp.eq.s32.totalorder %v476, 16
        %vm819 = vcmp.eq.s32.totalorder %v477, 16
        %vm820 = vcmp.eq.s32.totalorder %v478, 16
        %vm821 = vcmp.eq.s32.totalorder %v479, 16
        %vm822 = vcmp.eq.s32.totalorder %v480, 16
        %vm823 = vcmp.eq.s32.totalorder %v481, 16
        %vm824 = vcmp.eq.s32.totalorder %v482, 16
        %vm825 = vcmp.eq.s32.totalorder %v483, 16
        %vm826 = vcmp.eq.s32.totalorder %v484, 16
        %vm827 = vcmp.eq.s32.totalorder %v485, 16
        %vm828 = vcmp.eq.s32.totalorder %v486, 16
        %vm829 = vcmp.eq.s32.totalorder %v487, 16
        %vm830 = vcmp.eq.s32.totalorder %v488, 16
        %vm831 = vcmp.eq.s32.totalorder %v489, 16
        %vm832 = vcmp.eq.s32.totalorder %v490, 16
        %vm833 = vcmp.eq.s32.totalorder %v491, 16
        %vm834 = vcmp.eq.s32.totalorder %v492, 16
        %vm835 = vcmp.eq.s32.totalorder %v493, 16
        %vm836 = vcmp.eq.s32.totalorder %v494, 16
        %vm837 = vcmp.eq.s32.totalorder %v495, 16
        %vm838 = vcmp.eq.s32.totalorder %v496, 16
        %vm839 = vcmp.eq.s32.totalorder %v497, 16
        %vm840 = vcmp.eq.s32.totalorder %v498, 16
        %vm841 = vcmp.eq.s32.totalorder %v499, 16
        %vm842 = vcmp.eq.s32.totalorder %v500, 16
        %vm843 = vcmp.eq.s32.totalorder %v501, 16
        %vm844 = vcmp.eq.s32.totalorder %v502, 16
        %vm845 = vcmp.eq.s32.totalorder %v503, 16
        %vm846 = vcmp.eq.s32.totalorder %v504, 16
        %vm847 = vcmp.eq.s32.totalorder %v505, 16
        %vm848 = vcmp.eq.s32.totalorder %v506, 16
        %vm849 = vcmp.eq.s32.totalorder %v507, 16
        %vm850 = vcmp.eq.s32.totalorder %v508, 16
        %vm851 = vcmp.eq.s32.totalorder %v509, 16
        %vm852 = vcmp.eq.s32.totalorder %v510, 16
        %vm853 = vcmp.eq.s32.totalorder %v511, 16
        %vm854 = vcmp.eq.s32.totalorder %v512, 16
        %vm855 = vcmp.eq.s32.totalorder %v513, 16
        %vm856 = vcmp.eq.s32.totalorder %v514, 16
        %vm857 = vcmp.eq.s32.totalorder %v515, 16
        %vm858 = vcmp.eq.s32.totalorder %v516, 16
        %vm859 = vcmp.eq.s32.totalorder %v517, 16
        %vm860 = vcmp.eq.s32.totalorder %v518, 16
        %vm861 = vcmp.eq.s32.totalorder %v519, 16
        %vm862 = vcmp.eq.s32.totalorder %v520, 16
        %vm863 = vcmp.eq.s32.totalorder %v521, 16
        %vm864 = vcmp.eq.s32.totalorder %v522, 16
        %vm865 = vcmp.eq.s32.totalorder %v523, 16
        %v867 = vlaneseq
        %v868 = vshrl.u32 %v867, 7
        %v869 = vsub.s32 0, %v868
        %v870 = vrot.slane %v378, %v869
        %v871 = vlaneseq
        %v872 = vshrl.u32 %v871, 7
        %v873 = vsub.s32 1, %v872
        %v874 = vrot.slane %v378, %v873
        %v877 = vsel %vm802, %v870, %v738
        %v878 = vsel %vm803, %v874, %v739
        %v879 = vsel %vm804, %v870, %v740
        %v880 = vsel %vm805, %v874, %v741
        %v881 = vsel %vm806, %v870, %v742
        %v882 = vsel %vm807, %v874, %v743
        %v883 = vsel %vm808, %v870, %v744
        %v884 = vsel %vm809, %v874, %v745
        %v885 = vsel %vm810, %v870, %v746
        %v886 = vsel %vm811, %v874, %v747
        %v887 = vsel %vm812, %v870, %v748
        %v888 = vsel %vm813, %v874, %v749
        %v889 = vsel %vm814, %v870, %v750
        %v890 = vsel %vm815, %v874, %v751
        %v891 = vsel %vm816, %v870, %v752
        %v892 = vsel %vm817, %v874, %v753
        %v893 = vsel %vm818, %v870, %v754
        %v894 = vsel %vm819, %v874, %v755
        %v895 = vsel %vm820, %v870, %v756
        %v896 = vsel %vm821, %v874, %v757
        %v897 = vsel %vm822, %v870, %v758
        %v898 = vsel %vm823, %v874, %v759
        %v899 = vsel %vm824, %v870, %v760
        %v900 = vsel %vm825, %v874, %v761
        %v901 = vsel %vm826, %v870, %v762
        %v902 = vsel %vm827, %v874, %v763
        %v903 = vsel %vm828, %v870, %v764
        %v904 = vsel %vm829, %v874, %v765
        %v905 = vsel %vm830, %v870, %v766
        %v906 = vsel %vm831, %v874, %v767
        %v907 = vsel %vm832, %v870, %v768
        %v908 = vsel %vm833, %v874, %v769
        %v909 = vsel %vm834, %v870, %v770
        %v910 = vsel %vm835, %v874, %v771
        %v911 = vsel %vm836, %v870, %v772
        %v912 = vsel %vm837, %v874, %v773
        %v913 = vsel %vm838, %v870, %v774
        %v914 = vsel %vm839, %v874, %v775
        %v915 = vsel %vm840, %v870, %v776
        %v916 = vsel %vm841, %v874, %v777
        %v917 = vsel %vm842, %v870, %v778
        %v918 = vsel %vm843, %v874, %v779
        %v919 = vsel %vm844, %v870, %v780
        %v920 = vsel %vm845, %v874, %v781
        %v921 = vsel %vm846, %v870, %v782
        %v922 = vsel %vm847, %v874, %v783
        %v923 = vsel %vm848, %v870, %v784
        %v924 = vsel %vm849, %v874, %v785
        %v925 = vsel %vm850, %v870, %v786
        %v926 = vsel %vm851, %v874, %v787
        %v927 = vsel %vm852, %v870, %v788
        %v928 = vsel %vm853, %v874, %v789
        %v929 = vsel %vm854, %v870, %v790
        %v930 = vsel %vm855, %v874, %v791
        %v931 = vsel %vm856, %v870, %v792
        %v932 = vsel %vm857, %v874, %v793
        %v933 = vsel %vm858, %v870, %v794
        %v934 = vsel %vm859, %v874, %v795
        %v935 = vsel %vm860, %v870, %v796
        %v936 = vsel %vm861, %v874, %v797
        %v937 = vsel %vm862, %v870, %v798
        %v938 = vsel %vm863, %v874, %v799
        %v939 = vsel %vm864, %v870, %v800
        %v940 = vsel %vm865, %v874, %v801
        %vm941 = vcmp.eq.s32.totalorder %v460, 17
        %vm942 = vcmp.eq.s32.totalorder %v461, 17
        %vm943 = vcmp.eq.s32.totalorder %v462, 17
        %vm944 = vcmp.eq.s32.totalorder %v463, 17
        %vm945 = vcmp.eq.s32.totalorder %v464, 17
        %vm946 = vcmp.eq.s32.totalorder %v465, 17
        %vm947 = vcmp.eq.s32.totalorder %v466, 17
        %vm948 = vcmp.eq.s32.totalorder %v467, 17
        %vm949 = vcmp.eq.s32.totalorder %v468, 17
        %vm950 = vcmp.eq.s32.totalorder %v469, 17
        %vm951 = vcmp.eq.s32.totalorder %v470, 17
        %vm952 = vcmp.eq.s32.totalorder %v471, 17
        %vm953 = vcmp.eq.s32.totalorder %v472, 17
        %vm954 = vcmp.eq.s32.totalorder %v473, 17
        %vm955 = vcmp.eq.s32.totalorder %v474, 17
        %vm956 = vcmp.eq.s32.totalorder %v475, 17
        %vm957 = vcmp.eq.s32.totalorder %v476, 17
        %vm958 = vcmp.eq.s32.totalorder %v477, 17
        %vm959 = vcmp.eq.s32.totalorder %v478, 17
        %vm960 = vcmp.eq.s32.totalorder %v479, 17
        %vm961 = vcmp.eq.s32.totalorder %v480, 17
        %vm962 = vcmp.eq.s32.totalorder %v481, 17
        %vm963 = vcmp.eq.s32.totalorder %v482, 17
        %vm964 = vcmp.eq.s32.totalorder %v483, 17
        %vm965 = vcmp.eq.s32.totalorder %v484, 17
        %vm966 = vcmp.eq.s32.totalorder %v485, 17
        %vm967 = vcmp.eq.s32.totalorder %v486, 17
        %vm968 = vcmp.eq.s32.totalorder %v487, 17
        %vm969 = vcmp.eq.s32.totalorder %v488, 17
        %vm970 = vcmp.eq.s32.totalorder %v489, 17
        %vm971 = vcmp.eq.s32.totalorder %v490, 17
        %vm972 = vcmp.eq.s32.totalorder %v491, 17
        %vm973 = vcmp.eq.s32.totalorder %v492, 17
        %vm974 = vcmp.eq.s32.totalorder %v493, 17
        %vm975 = vcmp.eq.s32.totalorder %v494, 17
        %vm976 = vcmp.eq.s32.totalorder %v495, 17
        %vm977 = vcmp.eq.s32.totalorder %v496, 17
        %vm978 = vcmp.eq.s32.totalorder %v497, 17
        %vm979 = vcmp.eq.s32.totalorder %v498, 17
        %vm980 = vcmp.eq.s32.totalorder %v499, 17
        %vm981 = vcmp.eq.s32.totalorder %v500, 17
        %vm982 = vcmp.eq.s32.totalorder %v501, 17
        %vm983 = vcmp.eq.s32.totalorder %v502, 17
        %vm984 = vcmp.eq.s32.totalorder %v503, 17
        %vm985 = vcmp.eq.s32.totalorder %v504, 17
        %vm986 = vcmp.eq.s32.totalorder %v505, 17
        %vm987 = vcmp.eq.s32.totalorder %v506, 17
        %vm988 = vcmp.eq.s32.totalorder %v507, 17
        %vm989 = vcmp.eq.s32.totalorder %v508, 17
        %vm990 = vcmp.eq.s32.totalorder %v509, 17
        %vm991 = vcmp.eq.s32.totalorder %v510, 17
        %vm992 = vcmp.eq.s32.totalorder %v511, 17
        %vm993 = vcmp.eq.s32.totalorder %v512, 17
        %vm994 = vcmp.eq.s32.totalorder %v513, 17
        %vm995 = vcmp.eq.s32.totalorder %v514, 17
        %vm996 = vcmp.eq.s32.totalorder %v515, 17
        %vm997 = vcmp.eq.s32.totalorder %v516, 17
        %vm998 = vcmp.eq.s32.totalorder %v517, 17
        %vm999 = vcmp.eq.s32.totalorder %v518, 17
        %vm1000 = vcmp.eq.s32.totalorder %v519, 17
        %vm1001 = vcmp.eq.s32.totalorder %v520, 17
        %vm1002 = vcmp.eq.s32.totalorder %v521, 17
        %vm1003 = vcmp.eq.s32.totalorder %v522, 17
        %vm1004 = vcmp.eq.s32.totalorder %v523, 17
        %v1006 = vlaneseq
        %v1007 = vshrl.u32 %v1006, 7
        %v1008 = vsub.s32 0, %v1007
        %v1009 = vrot.slane %v381, %v1008
        %v1010 = vlaneseq
        %v1011 = vshrl.u32 %v1010, 7
        %v1012 = vsub.s32 1, %v1011
        %v1013 = vrot.slane %v381, %v1012
        %v1016 = vsel %vm941, %v1009, %v877
        %v1017 = vsel %vm942, %v1013, %v878
        %v1018 = vsel %vm943, %v1009, %v879
        %v1019 = vsel %vm944, %v1013, %v880
        %v1020 = vsel %vm945, %v1009, %v881
        %v1021 = vsel %vm946, %v1013, %v882
        %v1022 = vsel %vm947, %v1009, %v883
        %v1023 = vsel %vm948, %v1013, %v884
        %v1024 = vsel %vm949, %v1009, %v885
        %v1025 = vsel %vm950, %v1013, %v886
        %v1026 = vsel %vm951, %v1009, %v887
        %v1027 = vsel %vm952, %v1013, %v888
        %v1028 = vsel %vm953, %v1009, %v889
        %v1029 = vsel %vm954, %v1013, %v890
        %v1030 = vsel %vm955, %v1009, %v891
        %v1031 = vsel %vm956, %v1013, %v892
        %v1032 = vsel %vm957, %v1009, %v893
        %v1033 = vsel %vm958, %v1013, %v894
        %v1034 = vsel %vm959, %v1009, %v895
        %v1035 = vsel %vm960, %v1013, %v896
        %v1036 = vsel %vm961, %v1009, %v897
        %v1037 = vsel %vm962, %v1013, %v898
        %v1038 = vsel %vm963, %v1009, %v899
        %v1039 = vsel %vm964, %v1013, %v900
        %v1040 = vsel %vm965, %v1009, %v901
        %v1041 = vsel %vm966, %v1013, %v902
        %v1042 = vsel %vm967, %v1009, %v903
        %v1043 = vsel %vm968, %v1013, %v904
        %v1044 = vsel %vm969, %v1009, %v905
        %v1045 = vsel %vm970, %v1013, %v906
        %v1046 = vsel %vm971, %v1009, %v907
        %v1047 = vsel %vm972, %v1013, %v908
        %v1048 = vsel %vm973, %v1009, %v909
        %v1049 = vsel %vm974, %v1013, %v910
        %v1050 = vsel %vm975, %v1009, %v911
        %v1051 = vsel %vm976, %v1013, %v912
        %v1052 = vsel %vm977, %v1009, %v913
        %v1053 = vsel %vm978, %v1013, %v914
        %v1054 = vsel %vm979, %v1009, %v915
        %v1055 = vsel %vm980, %v1013, %v916
        %v1056 = vsel %vm981, %v1009, %v917
        %v1057 = vsel %vm982, %v1013, %v918
        %v1058 = vsel %vm983, %v1009, %v919
        %v1059 = vsel %vm984, %v1013, %v920
        %v1060 = vsel %vm985, %v1009, %v921
        %v1061 = vsel %vm986, %v1013, %v922
        %v1062 = vsel %vm987, %v1009, %v923
        %v1063 = vsel %vm988, %v1013, %v924
        %v1064 = vsel %vm989, %v1009, %v925
        %v1065 = vsel %vm990, %v1013, %v926
        %v1066 = vsel %vm991, %v1009, %v927
        %v1067 = vsel %vm992, %v1013, %v928
        %v1068 = vsel %vm993, %v1009, %v929
        %v1069 = vsel %vm994, %v1013, %v930
        %v1070 = vsel %vm995, %v1009, %v931
        %v1071 = vsel %vm996, %v1013, %v932
        %v1072 = vsel %vm997, %v1009, %v933
        %v1073 = vsel %vm998, %v1013, %v934
        %v1074 = vsel %vm999, %v1009, %v935
        %v1075 = vsel %vm1000, %v1013, %v936
        %v1076 = vsel %vm1001, %v1009, %v937
        %v1077 = vsel %vm1002, %v1013, %v938
        %v1078 = vsel %vm1003, %v1009, %v939
        %v1079 = vsel %vm1004, %v1013, %v940
        %1080 = vmatprep.subr.mxu0 %v1017
        %1081 = vmatpush1.msra.mxu0 %v1016
        %1082 = vmatprep.subr.mxu0 %v1019
        %1083 = vmatpush1.msra.mxu0 %v1018
        %1084 = vmatprep.subr.mxu0 %v1021
        %1085 = vmatpush1.msra.mxu0 %v1020
        %1086 = vmatprep.subr.mxu0 %v1023
        %1087 = vmatpush1.msra.mxu0 %v1022
        %1088 = vmatprep.subr.mxu0 %v1025
        %1089 = vmatpush1.msra.mxu0 %v1024
        %1090 = vmatprep.subr.mxu0 %v1027
        %1091 = vmatpush1.msra.mxu0 %v1026
        %1092 = vmatprep.subr.mxu0 %v1029
        %1093 = vmatpush1.msra.mxu0 %v1028
        %1094 = vmatprep.subr.mxu0 %v1031
        %1095 = vmatpush1.msra.mxu0 %v1030
        %1096 = vmatprep.subr.mxu0 %v1033
        %1097 = vmatpush1.msra.mxu0 %v1032
        %1098 = vmatprep.subr.mxu0 %v1035
        %1099 = vmatpush1.msra.mxu0 %v1034
        %1100 = vmatprep.subr.mxu0 %v1037
        %1101 = vmatpush1.msra.mxu0 %v1036
        %1102 = vmatprep.subr.mxu0 %v1039
        %1103 = vmatpush1.msra.mxu0 %v1038
        %1104 = vmatprep.subr.mxu0 %v1041
        %1105 = vmatpush1.msra.mxu0 %v1040
        %1106 = vmatprep.subr.mxu0 %v1043
        %1107 = vmatpush1.msra.mxu0 %v1042
        %1108 = vmatprep.subr.mxu0 %v1045
        %1109 = vmatpush1.msra.mxu0 %v1044
        %1110 = vmatprep.subr.mxu0 %v1047
        %1111 = vmatpush1.msra.mxu0 %v1046
        %1112 = vmatprep.subr.mxu0 %v1049
        %1113 = vmatpush1.msra.mxu0 %v1048
        %1114 = vmatprep.subr.mxu0 %v1051
        %1115 = vmatpush1.msra.mxu0 %v1050
        %1116 = vmatprep.subr.mxu0 %v1053
        %1117 = vmatpush1.msra.mxu0 %v1052
        %1118 = vmatprep.subr.mxu0 %v1055
        %1119 = vmatpush1.msra.mxu0 %v1054
        %1120 = vmatprep.subr.mxu0 %v1057
        %1121 = vmatpush1.msra.mxu0 %v1056
        %1122 = vmatprep.subr.mxu0 %v1059
        %1123 = vmatpush1.msra.mxu0 %v1058
        %1124 = vmatprep.subr.mxu0 %v1061
        %1125 = vmatpush1.msra.mxu0 %v1060
        %1126 = vmatprep.subr.mxu0 %v1063
        %1127 = vmatpush1.msra.mxu0 %v1062
        %1128 = vmatprep.subr.mxu0 %v1065
        %1129 = vmatpush1.msra.mxu0 %v1064
        %1130 = vmatprep.subr.mxu0 %v1067
        %1131 = vmatpush1.msra.mxu0 %v1066
        %1132 = vmatprep.subr.mxu0 %v1069
        %1133 = vmatpush1.msra.mxu0 %v1068
        %1134 = vmatprep.subr.mxu0 %v1071
        %1135 = vmatpush1.msra.mxu0 %v1070
        %1136 = vmatprep.subr.mxu0 %v1073
        %1137 = vmatpush1.msra.mxu0 %v1072
        %1138 = vmatprep.subr.mxu0 %v1075
        %1139 = vmatpush1.msra.mxu0 %v1074
        %1140 = vmatprep.subr.mxu0 %v1077
        %1141 = vmatpush1.msra.mxu0 %v1076
        %1142 = vmatprep.subr.mxu0 %v1079
        %1143 = vmatpush1.msra.mxu0 %v1078
        %1144 = vmatprep.mubr.f32.mxu0 %v385
        %1145 = vmatmul.mubr.f32.gmra.mrb[0].mxu0 %v384
        %v1146 = vpop.f32.mrb[0].mxu0
        %v1147 = vadd.f32 0.0, %v1146
        %v1148 = vpop.f32.mrb[0].mxu0
        %v1149 = vadd.f32 0.0, %v1148
        %1150 = vdwg.mxu0
        %v1151 = vadd.f32 %v362, %v370
        %v1152 = vadd.f32 %v1151, %v378
        %v1153 = vadd.f32 %v1152, %v381
        %vm1154 = vcmp.gt.f32.partialorder %v1153, 0.999
        %v1155 = vsel %vm1154, 1, 0
        %v1156 = vcvt.s32.f32 %v1155
        %v1157 = vld [vmem:[%s285] sm:$0xff]
        %v1158 = vld [vmem:[%s285 + $0x8] sm:$0xff]
        %v1160 = vlaneseq
        %v1161 = vshrl.u32 %v1160, 7
        %v1162 = vsub.s32 0, %v1161
        %v1163 = vrot.slane %v1156, %v1162
        %v1164 = vlaneseq
        %v1165 = vshrl.u32 %v1164, 7
        %v1166 = vsub.s32 1, %v1165
        %v1167 = vrot.slane %v1156, %v1166
        %v1170 = vmul.f32 %v1147, %v1163
        %v1171 = vmul.f32 %v1149, %v1167
        %v1172 = vsub.f32 %v1157, %v1170
        %v1173 = vsub.f32 %v1158, %v1171
        %v1174 = vmul.f32 %v1172, %v1172
        %v1175 = vmul.f32 %v1173, %v1173
        %v1176 = vadd.f32 %v1174, %v1175
        %1177 = vadd.xlane.f32.xlu0 %v1176
        %v1178 = vpop.xlane.xlu0 %1177
        %v1179 = vrot.slane %v1178, 4
        %v1180 = vadd.f32 %v1178, %v1179
        %v1181 = vrot.slane %v1180, 2
        %v1182 = vadd.f32 %v1180, %v1181
        %v1183 = vrot.slane %v1182, 1
        %v1184 = vadd.f32 %v1182, %v1183
        %1185 = vst [vmem:[%s328] sm:$0xff] %v1184
        %s1186 = sand.u32 %s154, 1
        %s1187 = scalar_lea.sflag [#allocation4], %s1186
        %s1188 = sand.u32 %s154, 1
        %s1189 = smul.addr %s1188, 8
        %s1190 = scalar_lea.vmem [#allocation10], %s1189
        // Predicated region
        $region53: #{tpu_custom_call.1} parent=35 // pred_check
          %p1191 = pneg %p164
        $region54: #{tpu_custom_call.1} parent=35 // pred_check_branch
          %1193 = sbr.rel (%p1191) target = $region56
        $region55: #{tpu_custom_call.1} parent=35 // pred_region
          %s1195 = ssub.s32 128, 128
          %1196 = vsyncadd %s1187, %s1195
          %s1197 = smul.addr %s29, 2
          %s1198 = sadd.s32 %s30, %s1197
          %s1199 = smul.addr %s1198, 128
          %s1200 = scalar_lea.hbm %s4, %s1199
          %s1202 = sshll.u32 %s1190, 4
          %s1203 = int_to_ptr.vmem [resolvable:$true] %s1202
          %1205 = dma.vmem_to_hbm [thread:$0]  %s1203, 128, %s1200, %s1187
        $region56: #{tpu_custom_call.1} parent=35 // pred_fallthru
          _
      $region36: #{tpu_custom_call.1} parent=5 // pred_fallthru
        _
      %p1206 = scmp.le.s32.totalorder 2, %s20
      // Predicated region
      $region57: #{tpu_custom_call.1} parent=5 // pred_check
        %p1207 = pneg %p1206
      $region58: #{tpu_custom_call.1} parent=5 // pred_check_branch
        %1209 = sbr.rel (%p1207) target = $region60
      $region59: #{tpu_custom_call.1} parent=5 // pred_region
        %s1210 = ssub.s32 %s20, 2
        // Predicated region
        $region61: #{tpu_custom_call.1} parent=59 // pred_check
          %p1211 = pneg %p170
        $region62: #{tpu_custom_call.1} parent=59 // pred_check_branch
          %1213 = sbr.rel (%p1211) target = $region64
        $region63: #{tpu_custom_call.1} parent=59 // pred_region
          %s1214 = sand.u32 %s155, 1
          %s1215 = scalar_lea.sflag [#allocation4], %s1214
          %s1216 = sand.u32 %s155, 1
          %s1217 = smul.addr %s1216, 8
          %s1218 = scalar_lea.vmem [#allocation10], %s1217
          %1219 = dma.done %s1215, 128
        $region64: #{tpu_custom_call.1} parent=59 // pred_fallthru
          _
      $region60: #{tpu_custom_call.1} parent=5 // pred_fallthru
        _
    $region6: #{tpu_custom_call.1} parent=1 // loop_footer
      %s24 = sadd.s32 1, %s20
    $region7: #{tpu_custom_call.1} parent=1 // loop_footer_branch
      %19 = sbr.rel target = $region3
    $region8: #{tpu_custom_call.1} parent=1 // loop_exit
      _
    %1220 = vsyncpa [#allocation3], 1
    %s1221 = scalar_lea.sflag [#allocation3], 1
    %1222 = vsyncpa %s1221, 1
    %1223 = vsyncpa [#allocation6], 1
    %s1224 = scalar_lea.sflag [#allocation6], 1
    %1225 = vsyncpa %s1224, 1
    %1226 = vsyncpa [#allocation9], 1
    %s1227 = scalar_lea.sflag [#allocation9], 1
    %1228 = vsyncpa %s1227, 1
    %1229 = vsyncpa [#allocation4], 1
    %s1230 = scalar_lea.sflag [#allocation4], 1
    %1231 = vsyncpa %s1230, 1

</llo_original>
